<compile_context>
chip_gen: v5e
topology: v5e:2x2
jax: 0.10.0
libtpu: 0.0.40
codegen_flags: <defaults>
</compile_context>

<pallas_src>
import functools
import math

import jax
import jax.numpy as jnp
from jax.experimental import pallas as pl
from jax.experimental.pallas import tpu as pltpu


# ----------------------------- kernel -------------------------------------- #

def _layer_norm(x, gamma, beta, eps=1e-5):
    mean = jnp.mean(x, axis=-1, keepdims=True)
    var = jnp.mean((x - mean) ** 2, axis=-1, keepdims=True)
    return (x - mean) * jax.lax.rsqrt(var + eps) * gamma + beta


def decoder_stack_kernel(x_ref, bias_ref,
                         wqkv_ref, bqkv_ref, wo_ref, bo_ref,
                         g1_ref, be1_ref, g2_ref, be2_ref,
                         w1_ref, b1_ref, w2_ref, b2_ref,
                         o_ref, act_ref, *, n_heads, head_dim, embed_dim):
    l = pl.program_id(1)          # layer index (innermost, "arbitrary")
    n_l = pl.num_programs(1)
    E, D = embed_dim, head_dim

    # Load the input activation into the VMEM carry at the first layer.
    @pl.when(l == 0)
    def _():
        act_ref[...] = x_ref[0].astype(jnp.float32)

    x = act_ref[...]              # (S, E) f32, carried across layers
    mask_bias = bias_ref[0]       # (1, S): 0 where kept, -1e9 where masked

    # --- LayerNorm 1 + masked multi-head self attention ---
    xn = _layer_norm(x, g1_ref[0], be1_ref[0])

    # Packed QKV projection: one MXU push, lane width 3E.
    qkv = jnp.dot(xn, wqkv_ref[0], preferred_element_type=jnp.float32) + bqkv_ref[0]
    q = qkv[:, 0:E]               # (S, E)
    kT = qkv[:, E:2 * E].T        # (E, S): one 2-D transpose; per-head slices
    v = qkv[:, 2 * E:3 * E]       #          below are free sublane slices
    wo = wo_ref[0]                # (E, E)

    scale = 1.0 / math.sqrt(D)
    attn_out = None
    for h in range(n_heads):      # static unrolled loop over heads
        lo = h * D
        qh = q[:, lo:lo + D]                  # (S, D)
        khT = kT[lo:lo + D, :]                # (D, S) sublane slice (free)
        vh = v[:, lo:lo + D]                  # (S, D)

        s = jnp.dot(qh, khT, preferred_element_type=jnp.float32) * scale
        s = s + mask_bias                     # additive mask, hoisted out of loop
        s = s - jnp.max(s, axis=-1, keepdims=True)
        p = jnp.exp(s)
        p = p * pl.reciprocal(jnp.sum(p, axis=-1, keepdims=True), approx=True)

        ctx = jnp.dot(p, vh, preferred_element_type=jnp.float32)          # (S, D)
        # Fold through this head's slice of Wo (sublane slice) and accumulate;
        # this replaces jnp.concatenate over heads.
        part = jnp.dot(ctx, wo[lo:lo + D, :], preferred_element_type=jnp.float32)
        attn_out = part if attn_out is None else attn_out + part
    attn_out = attn_out + bo_ref[0]

    residual = x + attn_out

    # --- LayerNorm 2 + feed forward (+ residual) ---
    xn2 = _layer_norm(residual, g2_ref[0], be2_ref[0])
    h1 = jnp.maximum(
        jnp.dot(xn2, w1_ref[0], preferred_element_type=jnp.float32) + b1_ref[0], 0.0)
    ff = jnp.dot(h1, w2_ref[0], preferred_element_type=jnp.float32) + b2_ref[0]
    out = residual + ff           # Dropout: inference-mode identity (no-op).

    act_ref[...] = out            # carry to next layer

    # Only the last layer writes the HBM output block.
    @pl.when(l == n_l - 1)
    def _():
        o_ref[0] = out.astype(o_ref.dtype)


# ----------------------------- wrapper -------------------------------------- #

def decoder_stack(x, mask, params, *, n_heads):
    """Fused forward pass of the whole DecoderStack in one pallas_call."""
    B, S, E = x.shape
    L = len(params)
    head_dim = E // n_heads

    stack = lambda name: jnp.stack([p[name] for p in params])
    # Pack Q/K/V weights and biases per layer: (L, E, 3E) / (L, 1, 3E).
    wqkv = jnp.stack([jnp.concatenate([p["wq"], p["wk"], p["wv"]], axis=1)
                      for p in params])
    bqkv = jnp.stack([jnp.concatenate([p["bq"], p["bk"], p["bv"]], axis=1)
                      for p in params])
    wo, bo = stack("wo"), stack("bo")
    g1, be1, g2, be2 = stack("g1"), stack("be1"), stack("g2"), stack("be2")
    w1, b1, w2, b2 = stack("w1"), stack("b1"), stack("w2"), stack("b2")

    # Additive attention-mask bias, precomputed once (0 keep / -1e9 masked).
    mask_bias = jnp.where(mask == 0, -1e9, 0.0).astype(jnp.float32).reshape(B, 1, S)

    kernel = functools.partial(decoder_stack_kernel, n_heads=n_heads,
                               head_dim=head_dim, embed_dim=E)

    def wspec(arr):
        # full weight block for layer l; auto-pipelined over the layer axis.
        return pl.BlockSpec((1,) + arr.shape[1:], lambda b, l: (l, 0, 0))

    in_specs = [
        pl.BlockSpec((1, S, E), lambda b, l: (b, 0, 0)),   # x (read at l == 0)
        pl.BlockSpec((1, 1, S), lambda b, l: (b, 0, 0)),   # mask bias
        wspec(wqkv), wspec(bqkv), wspec(wo), wspec(bo),
        wspec(g1), wspec(be1), wspec(g2), wspec(be2),
        wspec(w1), wspec(b1), wspec(w2), wspec(b2),
    ]

    return pl.pallas_call(
        kernel,
        out_shape=jax.ShapeDtypeStruct((B, S, E), x.dtype),
        grid=(B, L),
        in_specs=in_specs,
        out_specs=pl.BlockSpec((1, S, E), lambda b, l: (b, 0, 0)),
        scratch_shapes=[pltpu.VMEM((S, E), jnp.float32)],   # activation carry
        compiler_params=pltpu.CompilerParams(
            dimension_semantics=("parallel", "arbitrary")),
    )(x, mask_bias, wqkv, bqkv, wo, bo, g1, be1, g2, be2, w1, b1, w2, b2)


# ----------------------------- params / reference --------------------------- #

def init_params(key, n_layers, E, F):
    params = []
    for _ in range(n_layers):
        key, *ks = jax.random.split(key, 8)
        nrm = lambda k, s: jax.random.normal(k, s, jnp.float32) * 0.02
        params.append(dict(
            wq=nrm(ks[0], (E, E)), bq=jnp.zeros((1, E), jnp.float32),
            wk=nrm(ks[2], (E, E)), bk=jnp.zeros((1, E), jnp.float32),
            wv=nrm(ks[3], (E, E)), bv=jnp.zeros((1, E), jnp.float32),
            wo=nrm(ks[4], (E, E)), bo=jnp.zeros((1, E), jnp.float32),
            g1=jnp.ones((1, E), jnp.float32), be1=jnp.zeros((1, E), jnp.float32),
            g2=jnp.ones((1, E), jnp.float32), be2=jnp.zeros((1, E), jnp.float32),
            w1=nrm(ks[5], (E, F)), b1=jnp.zeros((1, F), jnp.float32),
            w2=nrm(ks[6], (F, E)), b2=jnp.zeros((1, E), jnp.float32),
        ))
    return params


def ref_forward(x, mask, params, *, n_heads):
    """Pure-JAX reference matching the PyTorch DecoderStack semantics."""
    B, S, E = x.shape
    head_dim = E // n_heads
    out = x
    for p in params:
        xn = _layer_norm(out, p["g1"], p["be1"])
        q = xn @ p["wq"] + p["bq"]
        k = xn @ p["wk"] + p["bk"]
        v = xn @ p["wv"] + p["bv"]
        heads = []
        for h in range(n_heads):
            sl = slice(h * head_dim, (h + 1) * head_dim)
            aw = jnp.einsum('bqd,bkd->bqk', q[..., sl], k[..., sl]) / math.sqrt(head_dim)
            aw = jnp.where(mask[:, None, :] == 0.0, -1e9, aw)
            pa = jax.nn.softmax(aw, axis=-1)
            heads.append(jnp.einsum('bqk,bkd->bqd', pa, v[..., sl]))
        attn = jnp.concatenate(heads, axis=-1) @ p["wo"] + p["bo"]
        residual = out + attn
        xn2 = _layer_norm(residual, p["g2"], p["be2"])
        ff = jnp.maximum(xn2 @ p["w1"] + p["b1"], 0.0) @ p["w2"] + p["b2"]
        out = residual + ff
    return out


# ----------------------------- main ----------------------------------------- #

if __name__ == "__main__":
    B, S, E, HEADS, FWD, LAYERS = 2, 8, 32, 4, 64, 2

    key = jax.random.PRNGKey(0)
    kx, kp = jax.random.split(key)
    x = jax.random.normal(kx, (B, S, E), jnp.float32)
    mask = jnp.ones((B, S), jnp.float32)
    mask = mask.at[1, 6:].set(0.0)          # mask out last two tokens of batch 1

    params = init_params(kp, LAYERS, E, FWD)

    fwd = jax.jit(functools.partial(decoder_stack, n_heads=HEADS))
    out = jax.block_until_ready(fwd(x, mask, params))

    ref = ref_forward(x, mask, params, n_heads=HEADS)
    assert out.shape == (B, S, E)
    # tolerance loosened slightly: softmax denominator uses approx EUP reciprocal
    assert jnp.allclose(out, ref, atol=1e-3, rtol=1e-3), \
        f"max abs err {jnp.max(jnp.abs(out - ref))}"

    print("KERNEL_OK")
</pallas_src>

<mosaic_0001>
module attributes {stable_mosaic.version = 11 : i64} {
  func.func @decoder_stack_kernel(%arg0: i32, %arg1: i32, %arg2: memref<1x8x32xf32, #tpu.memory_space<vmem>>, %arg3: memref<1x1x8xf32, #tpu.memory_space<vmem>>, %arg4: memref<1x32x96xf32, #tpu.memory_space<vmem>>, %arg5: memref<1x1x96xf32, #tpu.memory_space<vmem>>, %arg6: memref<1x32x32xf32, #tpu.memory_space<vmem>>, %arg7: memref<1x1x32xf32, #tpu.memory_space<vmem>>, %arg8: memref<1x1x32xf32, #tpu.memory_space<vmem>>, %arg9: memref<1x1x32xf32, #tpu.memory_space<vmem>>, %arg10: memref<1x1x32xf32, #tpu.memory_space<vmem>>, %arg11: memref<1x1x32xf32, #tpu.memory_space<vmem>>, %arg12: memref<1x32x64xf32, #tpu.memory_space<vmem>>, %arg13: memref<1x1x64xf32, #tpu.memory_space<vmem>>, %arg14: memref<1x64x32xf32, #tpu.memory_space<vmem>>, %arg15: memref<1x1x32xf32, #tpu.memory_space<vmem>>, %arg16: memref<1x8x32xf32, #tpu.memory_space<vmem>>, %arg17: memref<8x32xf32, #tpu.memory_space<vmem>>) attributes {dimension_semantics = [#tpu.dimension_semantics<parallel>, #tpu.dimension_semantics<arbitrary>], iteration_bounds = array<i64: 2, 2>, scalar_prefetch = 0 : i64, scratch_operands = 1 : i64, tpu.core_type = #tpu.core_type<tc>, window_params = [{transform_indices = @transform_0, window_bounds = array<i64: 1, 8, 32>}, {transform_indices = @transform_1, window_bounds = array<i64: 1, 1, 8>}, {transform_indices = @transform_2, window_bounds = array<i64: 1, 32, 96>}, {transform_indices = @transform_3, window_bounds = array<i64: 1, 1, 96>}, {transform_indices = @transform_4, window_bounds = array<i64: 1, 32, 32>}, {transform_indices = @transform_5, window_bounds = array<i64: 1, 1, 32>}, {transform_indices = @transform_6, window_bounds = array<i64: 1, 1, 32>}, {transform_indices = @transform_7, window_bounds = array<i64: 1, 1, 32>}, {transform_indices = @transform_8, window_bounds = array<i64: 1, 1, 32>}, {transform_indices = @transform_9, window_bounds = array<i64: 1, 1, 32>}, {transform_indices = @transform_10, window_bounds = array<i64: 1, 32, 64>}, {transform_indices = @transform_11, window_bounds = array<i64: 1, 1, 64>}, {transform_indices = @transform_12, window_bounds = array<i64: 1, 64, 32>}, {transform_indices = @transform_13, window_bounds = array<i64: 1, 1, 32>}, {transform_indices = @transform_14, window_bounds = array<i64: 1, 8, 32>}]} {
    %c0_i32 = arith.constant 0 : i32
    %0 = arith.cmpi eq, %arg1, %c0_i32 : i32
    %1 = arith.extui %0 : i1 to i32
    %c0_i32_0 = arith.constant 0 : i32
    %2 = arith.cmpi ne, %1, %c0_i32_0 : i32
    scf.if %2 {
      %c0_81 = arith.constant 0 : index
      %c0_82 = arith.constant 0 : index
      %c0_83 = arith.constant 0 : index
      %184 = vector.load %arg2[%c0_81, %c0_82, %c0_83] : memref<1x8x32xf32, #tpu.memory_space<vmem>>, vector<1x8x32xf32>
      %185 = vector.shape_cast %184 : vector<1x8x32xf32> to vector<8x32xf32>
      %c0_84 = arith.constant 0 : index
      %c0_85 = arith.constant 0 : index
      %186 = vector.load %arg17[%c0_84, %c0_85] : memref<8x32xf32, #tpu.memory_space<vmem>>, vector<8x32xf32>
      tpu.vector_store %arg17[%c0_84, %c0_85], %185 {strides = array<i32>} : memref<8x32xf32, #tpu.memory_space<vmem>>, vector<8x32xf32>,
    } else {
    }
    %c0 = arith.constant 0 : index
    %c0_1 = arith.constant 0 : index
    %3 = vector.load %arg17[%c0, %c0_1] : memref<8x32xf32, #tpu.memory_space<vmem>>, vector<8x32xf32>
    %c0_2 = arith.constant 0 : index
    %c0_3 = arith.constant 0 : index
    %c0_4 = arith.constant 0 : index
    %4 = vector.load %arg3[%c0_2, %c0_3, %c0_4] : memref<1x1x8xf32, #tpu.memory_space<vmem>>, vector<1x1x8xf32>
    %5 = vector.shape_cast %4 : vector<1x1x8xf32> to vector<1x8xf32>
    %c0_5 = arith.constant 0 : index
    %c0_6 = arith.constant 0 : index
    %c0_7 = arith.constant 0 : index
    %6 = vector.load %arg8[%c0_5, %c0_6, %c0_7] : memref<1x1x32xf32, #tpu.memory_space<vmem>>, vector<1x1x32xf32>
    %7 = vector.shape_cast %6 : vector<1x1x32xf32> to vector<1x32xf32>
    %c0_8 = arith.constant 0 : index
    %c0_9 = arith.constant 0 : index
    %c0_10 = arith.constant 0 : index
    %8 = vector.load %arg9[%c0_8, %c0_9, %c0_10] : memref<1x1x32xf32, #tpu.memory_space<vmem>>, vector<1x1x32xf32>
    %9 = vector.shape_cast %8 : vector<1x1x32xf32> to vector<1x32xf32>
    %cst = arith.constant dense<0.000000e+00> : vector<8xf32>
    %10 = vector.multi_reduction <add>, %3, %cst [1] : vector<8x32xf32> to vector<8xf32>
    %11 = vector.shape_cast %10 : vector<8xf32> to vector<8x1xf32>
    %cst_11 = arith.constant 3.200000e+01 : f32
    %12 = vector.broadcast %cst_11 : f32 to vector<8x1xf32>
    %13 = arith.divf %11, %12 : vector<8x1xf32>
    %14 = vector.broadcast %13 : vector<8x1xf32> to vector<8x32xf32>
    %15 = arith.subf %3, %14 : vector<8x32xf32>
    %16 = arith.mulf %15, %15 : vector<8x32xf32>
    %cst_12 = arith.constant dense<0.000000e+00> : vector<8xf32>
    %17 = vector.multi_reduction <add>, %16, %cst_12 [1] : vector<8x32xf32> to vector<8xf32>
    %18 = vector.shape_cast %17 : vector<8xf32> to vector<8x1xf32>
    %cst_13 = arith.constant 3.200000e+01 : f32
    %19 = vector.broadcast %cst_13 : f32 to vector<8x1xf32>
    %20 = arith.divf %18, %19 : vector<8x1xf32>
    %21 = vector.broadcast %13 : vector<8x1xf32> to vector<8x32xf32>
    %22 = arith.subf %3, %21 : vector<8x32xf32>
    %cst_14 = arith.constant 9.99999974E-6 : f32
    %23 = vector.broadcast %cst_14 : f32 to vector<8x1xf32>
    %24 = arith.addf %20, %23 : vector<8x1xf32>
    %25 = math.rsqrt %24 : vector<8x1xf32>
    %26 = vector.broadcast %25 : vector<8x1xf32> to vector<8x32xf32>
    %27 = arith.mulf %22, %26 : vector<8x32xf32>
    %28 = vector.broadcast %7 : vector<1x32xf32> to vector<8x32xf32>
    %29 = arith.mulf %27, %28 : vector<8x32xf32>
    %30 = vector.broadcast %9 : vector<1x32xf32> to vector<8x32xf32>
    %31 = arith.addf %29, %30 : vector<8x32xf32>
    %c0_15 = arith.constant 0 : index
    %c0_16 = arith.constant 0 : index
    %c0_17 = arith.constant 0 : index
    %32 = vector.load %arg4[%c0_15, %c0_16, %c0_17] : memref<1x32x96xf32, #tpu.memory_space<vmem>>, vector<1x32x96xf32>
    %33 = vector.shape_cast %32 : vector<1x32x96xf32> to vector<32x96xf32>
    %cst_18 = arith.constant dense<0.000000e+00> : vector<8x96xf32>
    %34 = tpu.matmul %31, %33, %cst_18 {dimension_numbers = #tpu.dot_dimension_numbers<[1], [0], [0], [1], [0, 0, 1, 1], [], []>} : vector<8x32xf32>, vector<32x96xf32>, vector<8x96xf32> -> vector<8x96xf32>
    %c0_19 = arith.constant 0 : index
    %c0_20 = arith.constant 0 : index
    %c0_21 = arith.constant 0 : index
    %35 = vector.load %arg5[%c0_19, %c0_20, %c0_21] : memref<1x1x96xf32, #tpu.memory_space<vmem>>, vector<1x1x96xf32>
    %36 = vector.shape_cast %35 : vector<1x1x96xf32> to vector<1x96xf32>
    %37 = vector.broadcast %36 : vector<1x96xf32> to vector<8x96xf32>
    %38 = arith.addf %34, %37 : vector<8x96xf32>
    %39 = vector.extract_strided_slice %38 {offsets = [0, 0], sizes = [8, 32], strides = [1, 1]} : vector<8x96xf32> to vector<8x32xf32>
    %40 = vector.extract_strided_slice %38 {offsets = [0, 32], sizes = [8, 32], strides = [1, 1]} : vector<8x96xf32> to vector<8x32xf32>
    %41 = tpu.transpose %40, [1, 0] : vector<8x32xf32> -> vector<32x8xf32>
    %42 = vector.extract_strided_slice %38 {offsets = [0, 64], sizes = [8, 32], strides = [1, 1]} : vector<8x96xf32> to vector<8x32xf32>
    %c0_22 = arith.constant 0 : index
    %c0_23 = arith.constant 0 : index
    %c0_24 = arith.constant 0 : index
    %43 = vector.load %arg6[%c0_22, %c0_23, %c0_24] : memref<1x32x32xf32, #tpu.memory_space<vmem>>, vector<1x32x32xf32>
    %44 = vector.shape_cast %43 : vector<1x32x32xf32> to vector<32x32xf32>
    %45 = vector.extract_strided_slice %39 {offsets = [0, 0], sizes = [8, 8], strides = [1, 1]} : vector<8x32xf32> to vector<8x8xf32>
    %46 = vector.extract_strided_slice %41 {offsets = [0, 0], sizes = [8, 8], strides = [1, 1]} : vector<32x8xf32> to vector<8x8xf32>
    %47 = vector.extract_strided_slice %42 {offsets = [0, 0], sizes = [8, 8], strides = [1, 1]} : vector<8x32xf32> to vector<8x8xf32>
    %cst_25 = arith.constant dense<0.000000e+00> : vector<8x8xf32>
    %48 = tpu.matmul %45, %46, %cst_25 {dimension_numbers = #tpu.dot_dimension_numbers<[1], [0], [0], [1], [0, 0, 1, 1], [], []>} : vector<8x8xf32>, vector<8x8xf32>, vector<8x8xf32> -> vector<8x8xf32>
    %cst_26 = arith.constant 0.353553385 : f32
    %49 = vector.broadcast %cst_26 : f32 to vector<8x8xf32>
    %50 = arith.mulf %48, %49 : vector<8x8xf32>
    %51 = vector.broadcast %5 : vector<1x8xf32> to vector<8x8xf32>
    %52 = arith.addf %50, %51 : vector<8x8xf32>
    %cst_27 = arith.constant dense<0xFF800000> : vector<8xf32>
    %53 = vector.multi_reduction <maximumf>, %52, %cst_27 [1] : vector<8x8xf32> to vector<8xf32>
    %54 = vector.shape_cast %53 : vector<8xf32> to vector<8x1xf32>
    %55 = vector.broadcast %54 : vector<8x1xf32> to vector<8x8xf32>
    %56 = arith.subf %52, %55 : vector<8x8xf32>
    %57 = math.exp %56 : vector<8x8xf32>
    %cst_28 = arith.constant dense<0.000000e+00> : vector<8xf32>
    %58 = vector.multi_reduction <add>, %57, %cst_28 [1] : vector<8x8xf32> to vector<8xf32>
    %59 = vector.shape_cast %58 : vector<8xf32> to vector<8x1xf32>
    %60 = tpu.reciprocal %59 {approx = true} : vector<8x1xf32> -> vector<8x1xf32>
    %61 = vector.broadcast %60 : vector<8x1xf32> to vector<8x8xf32>
    %62 = arith.mulf %57, %61 : vector<8x8xf32>
    %cst_29 = arith.constant dense<0.000000e+00> : vector<8x8xf32>
    %63 = tpu.matmul %62, %47, %cst_29 {dimension_numbers = #tpu.dot_dimension_numbers<[1], [0], [0], [1], [0, 0, 1, 1], [], []>} : vector<8x8xf32>, vector<8x8xf32>, vector<8x8xf32> -> vector<8x8xf32>
    %64 = vector.extract_strided_slice %44 {offsets = [0, 0], sizes = [8, 32], strides = [1, 1]} : vector<32x32xf32> to vector<8x32xf32>
    %cst_30 = arith.constant dense<0.000000e+00> : vector<8x32xf32>
    %65 = tpu.matmul %63, %64, %cst_30 {dimension_numbers = #tpu.dot_dimension_numbers<[1], [0], [0], [1], [0, 0, 1, 1], [], []>} : vector<8x8xf32>, vector<8x32xf32>, vector<8x32xf32> -> vector<8x32xf32>
    %66 = vector.extract_strided_slice %39 {offsets = [0, 8], sizes = [8, 8], strides = [1, 1]} : vector<8x32xf32> to vector<8x8xf32>
    %67 = vector.extract_strided_slice %41 {offsets = [8, 0], sizes = [8, 8], strides = [1, 1]} : vector<32x8xf32> to vector<8x8xf32>
    %68 = vector.extract_strided_slice %42 {offsets = [0, 8], sizes = [8, 8], strides = [1, 1]} : vector<8x32xf32> to vector<8x8xf32>
    %cst_31 = arith.constant dense<0.000000e+00> : vector<8x8xf32>
    %69 = tpu.matmul %66, %67, %cst_31 {dimension_numbers = #tpu.dot_dimension_numbers<[1], [0], [0], [1], [0, 0, 1, 1], [], []>} : vector<8x8xf32>, vector<8x8xf32>, vector<8x8xf32> -> vector<8x8xf32>
    %cst_32 = arith.constant 0.353553385 : f32
    %70 = vector.broadcast %cst_32 : f32 to vector<8x8xf32>
    %71 = arith.mulf %69, %70 : vector<8x8xf32>
    %72 = vector.broadcast %5 : vector<1x8xf32> to vector<8x8xf32>
    %73 = arith.addf %71, %72 : vector<8x8xf32>
    %cst_33 = arith.constant dense<0xFF800000> : vector<8xf32>
    %74 = vector.multi_reduction <maximumf>, %73, %cst_33 [1] : vector<8x8xf32> to vector<8xf32>
    %75 = vector.shape_cast %74 : vector<8xf32> to vector<8x1xf32>
    %76 = vector.broadcast %75 : vector<8x1xf32> to vector<8x8xf32>
    %77 = arith.subf %73, %76 : vector<8x8xf32>
    %78 = math.exp %77 : vector<8x8xf32>
    %cst_34 = arith.constant dense<0.000000e+00> : vector<8xf32>
    %79 = vector.multi_reduction <add>, %78, %cst_34 [1] : vector<8x8xf32> to vector<8xf32>
    %80 = vector.shape_cast %79 : vector<8xf32> to vector<8x1xf32>
    %81 = tpu.reciprocal %80 {approx = true} : vector<8x1xf32> -> vector<8x1xf32>
    %82 = vector.broadcast %81 : vector<8x1xf32> to vector<8x8xf32>
    %83 = arith.mulf %78, %82 : vector<8x8xf32>
    %cst_35 = arith.constant dense<0.000000e+00> : vector<8x8xf32>
    %84 = tpu.matmul %83, %68, %cst_35 {dimension_numbers = #tpu.dot_dimension_numbers<[1], [0], [0], [1], [0, 0, 1, 1], [], []>} : vector<8x8xf32>, vector<8x8xf32>, vector<8x8xf32> -> vector<8x8xf32>
    %85 = vector.extract_strided_slice %44 {offsets = [8, 0], sizes = [8, 32], strides = [1, 1]} : vector<32x32xf32> to vector<8x32xf32>
    %cst_36 = arith.constant dense<0.000000e+00> : vector<8x32xf32>
    %86 = tpu.matmul %84, %85, %cst_36 {dimension_numbers = #tpu.dot_dimension_numbers<[1], [0], [0], [1], [0, 0, 1, 1], [], []>} : vector<8x8xf32>, vector<8x32xf32>, vector<8x32xf32> -> vector<8x32xf32>
    %87 = arith.addf %65, %86 : vector<8x32xf32>
    %88 = vector.extract_strided_slice %39 {offsets = [0, 16], sizes = [8, 8], strides = [1, 1]} : vector<8x32xf32> to vector<8x8xf32>
    %89 = vector.extract_strided_slice %41 {offsets = [16, 0], sizes = [8, 8], strides = [1, 1]} : vector<32x8xf32> to vector<8x8xf32>
    %90 = vector.extract_strided_slice %42 {offsets = [0, 16], sizes = [8, 8], strides = [1, 1]} : vector<8x32xf32> to vector<8x8xf32>
    %cst_37 = arith.constant dense<0.000000e+00> : vector<8x8xf32>
    %91 = tpu.matmul %88, %89, %cst_37 {dimension_numbers = #tpu.dot_dimension_numbers<[1], [0], [0], [1], [0, 0, 1, 1], [], []>} : vector<8x8xf32>, vector<8x8xf32>, vector<8x8xf32> -> vector<8x8xf32>
    %cst_38 = arith.constant 0.353553385 : f32
    %92 = vector.broadcast %cst_38 : f32 to vector<8x8xf32>
    %93 = arith.mulf %91, %92 : vector<8x8xf32>
    %94 = vector.broadcast %5 : vector<1x8xf32> to vector<8x8xf32>
    %95 = arith.addf %93, %94 : vector<8x8xf32>
    %cst_39 = arith.constant dense<0xFF800000> : vector<8xf32>
    %96 = vector.multi_reduction <maximumf>, %95, %cst_39 [1] : vector<8x8xf32> to vector<8xf32>
    %97 = vector.shape_cast %96 : vector<8xf32> to vector<8x1xf32>
    %98 = vector.broadcast %97 : vector<8x1xf32> to vector<8x8xf32>
    %99 = arith.subf %95, %98 : vector<8x8xf32>
    %100 = math.exp %99 : vector<8x8xf32>
    %cst_40 = arith.constant dense<0.000000e+00> : vector<8xf32>
    %101 = vector.multi_reduction <add>, %100, %cst_40 [1] : vector<8x8xf32> to vector<8xf32>
    %102 = vector.shape_cast %101 : vector<8xf32> to vector<8x1xf32>
    %103 = tpu.reciprocal %102 {approx = true} : vector<8x1xf32> -> vector<8x1xf32>
    %104 = vector.broadcast %103 : vector<8x1xf32> to vector<8x8xf32>
    %105 = arith.mulf %100, %104 : vector<8x8xf32>
    %cst_41 = arith.constant dense<0.000000e+00> : vector<8x8xf32>
    %106 = tpu.matmul %105, %90, %cst_41 {dimension_numbers = #tpu.dot_dimension_numbers<[1], [0], [0], [1], [0, 0, 1, 1], [], []>} : vector<8x8xf32>, vector<8x8xf32>, vector<8x8xf32> -> vector<8x8xf32>
    %107 = vector.extract_strided_slice %44 {offsets = [16, 0], sizes = [8, 32], strides = [1, 1]} : vector<32x32xf32> to vector<8x32xf32>
    %cst_42 = arith.constant dense<0.000000e+00> : vector<8x32xf32>
    %108 = tpu.matmul %106, %107, %cst_42 {dimension_numbers = #tpu.dot_dimension_numbers<[1], [0], [0], [1], [0, 0, 1, 1], [], []>} : vector<8x8xf32>, vector<8x32xf32>, vector<8x32xf32> -> vector<8x32xf32>
    %109 = arith.addf %87, %108 : vector<8x32xf32>
    %110 = vector.extract_strided_slice %39 {offsets = [0, 24], sizes = [8, 8], strides = [1, 1]} : vector<8x32xf32> to vector<8x8xf32>
    %111 = vector.extract_strided_slice %41 {offsets = [24, 0], sizes = [8, 8], strides = [1, 1]} : vector<32x8xf32> to vector<8x8xf32>
    %112 = vector.extract_strided_slice %42 {offsets = [0, 24], sizes = [8, 8], strides = [1, 1]} : vector<8x32xf32> to vector<8x8xf32>
    %cst_43 = arith.constant dense<0.000000e+00> : vector<8x8xf32>
    %113 = tpu.matmul %110, %111, %cst_43 {dimension_numbers = #tpu.dot_dimension_numbers<[1], [0], [0], [1], [0, 0, 1, 1], [], []>} : vector<8x8xf32>, vector<8x8xf32>, vector<8x8xf32> -> vector<8x8xf32>
    %cst_44 = arith.constant 0.353553385 : f32
    %114 = vector.broadcast %cst_44 : f32 to vector<8x8xf32>
    %115 = arith.mulf %113, %114 : vector<8x8xf32>
    %116 = vector.broadcast %5 : vector<1x8xf32> to vector<8x8xf32>
    %117 = arith.addf %115, %116 : vector<8x8xf32>
    %cst_45 = arith.constant dense<0xFF800000> : vector<8xf32>
    %118 = vector.multi_reduction <maximumf>, %117, %cst_45 [1] : vector<8x8xf32> to vector<8xf32>
    %119 = vector.shape_cast %118 : vector<8xf32> to vector<8x1xf32>
    %120 = vector.broadcast %119 : vector<8x1xf32> to vector<8x8xf32>
    %121 = arith.subf %117, %120 : vector<8x8xf32>
    %122 = math.exp %121 : vector<8x8xf32>
    %cst_46 = arith.constant dense<0.000000e+00> : vector<8xf32>
    %123 = vector.multi_reduction <add>, %122, %cst_46 [1] : vector<8x8xf32> to vector<8xf32>
    %124 = vector.shape_cast %123 : vector<8xf32> to vector<8x1xf32>
    %125 = tpu.reciprocal %124 {approx = true} : vector<8x1xf32> -> vector<8x1xf32>
    %126 = vector.broadcast %125 : vector<8x1xf32> to vector<8x8xf32>
    %127 = arith.mulf %122, %126 : vector<8x8xf32>
    %cst_47 = arith.constant dense<0.000000e+00> : vector<8x8xf32>
    %128 = tpu.matmul %127, %112, %cst_47 {dimension_numbers = #tpu.dot_dimension_numbers<[1], [0], [0], [1], [0, 0, 1, 1], [], []>} : vector<8x8xf32>, vector<8x8xf32>, vector<8x8xf32> -> vector<8x8xf32>
    %129 = vector.extract_strided_slice %44 {offsets = [24, 0], sizes = [8, 32], strides = [1, 1]} : vector<32x32xf32> to vector<8x32xf32>
    %cst_48 = arith.constant dense<0.000000e+00> : vector<8x32xf32>
    %130 = tpu.matmul %128, %129, %cst_48 {dimension_numbers = #tpu.dot_dimension_numbers<[1], [0], [0], [1], [0, 0, 1, 1], [], []>} : vector<8x8xf32>, vector<8x32xf32>, vector<8x32xf32> -> vector<8x32xf32>
    %131 = arith.addf %109, %130 : vector<8x32xf32>
    %c0_49 = arith.constant 0 : index
    %c0_50 = arith.constant 0 : index
    %c0_51 = arith.constant 0 : index
    %132 = vector.load %arg7[%c0_49, %c0_50, %c0_51] : memref<1x1x32xf32, #tpu.memory_space<vmem>>, vector<1x1x32xf32>
    %133 = vector.shape_cast %132 : vector<1x1x32xf32> to vector<1x32xf32>
    %134 = vector.broadcast %133 : vector<1x32xf32> to vector<8x32xf32>
    %135 = arith.addf %131, %134 : vector<8x32xf32>
    %136 = arith.addf %3, %135 : vector<8x32xf32>
    %c0_52 = arith.constant 0 : index
    %c0_53 = arith.constant 0 : index
    %c0_54 = arith.constant 0 : index
    %137 = vector.load %arg10[%c0_52, %c0_53, %c0_54] : memref<1x1x32xf32, #tpu.memory_space<vmem>>, vector<1x1x32xf32>
    %138 = vector.shape_cast %137 : vector<1x1x32xf32> to vector<1x32xf32>
    %c0_55 = arith.constant 0 : index
    %c0_56 = arith.constant 0 : index
    %c0_57 = arith.constant 0 : index
    %139 = vector.load %arg11[%c0_55, %c0_56, %c0_57] : memref<1x1x32xf32, #tpu.memory_space<vmem>>, vector<1x1x32xf32>
    %140 = vector.shape_cast %139 : vector<1x1x32xf32> to vector<1x32xf32>
    %cst_58 = arith.constant dense<0.000000e+00> : vector<8xf32>
    %141 = vector.multi_reduction <add>, %136, %cst_58 [1] : vector<8x32xf32> to vector<8xf32>
    %142 = vector.shape_cast %141 : vector<8xf32> to vector<8x1xf32>
    %cst_59 = arith.constant 3.200000e+01 : f32
    %143 = vector.broadcast %cst_59 : f32 to vector<8x1xf32>
    %144 = arith.divf %142, %143 : vector<8x1xf32>
    %145 = vector.broadcast %144 : vector<8x1xf32> to vector<8x32xf32>
    %146 = arith.subf %136, %145 : vector<8x32xf32>
    %147 = arith.mulf %146, %146 : vector<8x32xf32>
    %cst_60 = arith.constant dense<0.000000e+00> : vector<8xf32>
    %148 = vector.multi_reduction <add>, %147, %cst_60 [1] : vector<8x32xf32> to vector<8xf32>
    %149 = vector.shape_cast %148 : vector<8xf32> to vector<8x1xf32>
    %cst_61 = arith.constant 3.200000e+01 : f32
    %150 = vector.broadcast %cst_61 : f32 to vector<8x1xf32>
    %151 = arith.divf %149, %150 : vector<8x1xf32>
    %152 = vector.broadcast %144 : vector<8x1xf32> to vector<8x32xf32>
    %153 = arith.subf %136, %152 : vector<8x32xf32>
    %cst_62 = arith.constant 9.99999974E-6 : f32
    %154 = vector.broadcast %cst_62 : f32 to vector<8x1xf32>
    %155 = arith.addf %151, %154 : vector<8x1xf32>
    %156 = math.rsqrt %155 : vector<8x1xf32>
    %157 = vector.broadcast %156 : vector<8x1xf32> to vector<8x32xf32>
    %158 = arith.mulf %153, %157 : vector<8x32xf32>
    %159 = vector.broadcast %138 : vector<1x32xf32> to vector<8x32xf32>
    %160 = arith.mulf %158, %159 : vector<8x32xf32>
    %161 = vector.broadcast %140 : vector<1x32xf32> to vector<8x32xf32>
    %162 = arith.addf %160, %161 : vector<8x32xf32>
    %c0_63 = arith.constant 0 : index
    %c0_64 = arith.constant 0 : index
    %c0_65 = arith.constant 0 : index
    %163 = vector.load %arg12[%c0_63, %c0_64, %c0_65] : memref<1x32x64xf32, #tpu.memory_space<vmem>>, vector<1x32x64xf32>
    %164 = vector.shape_cast %163 : vector<1x32x64xf32> to vector<32x64xf32>
    %cst_66 = arith.constant dense<0.000000e+00> : vector<8x64xf32>
    %165 = tpu.matmul %162, %164, %cst_66 {dimension_numbers = #tpu.dot_dimension_numbers<[1], [0], [0], [1], [0, 0, 1, 1], [], []>} : vector<8x32xf32>, vector<32x64xf32>, vector<8x64xf32> -> vector<8x64xf32>
    %c0_67 = arith.constant 0 : index
    %c0_68 = arith.constant 0 : index
    %c0_69 = arith.constant 0 : index
    %166 = vector.load %arg13[%c0_67, %c0_68, %c0_69] : memref<1x1x64xf32, #tpu.memory_space<vmem>>, vector<1x1x64xf32>
    %167 = vector.shape_cast %166 : vector<1x1x64xf32> to vector<1x64xf32>
    %168 = vector.broadcast %167 : vector<1x64xf32> to vector<8x64xf32>
    %169 = arith.addf %165, %168 : vector<8x64xf32>
    %cst_70 = arith.constant 0.000000e+00 : f32
    %170 = vector.broadcast %cst_70 : f32 to vector<8x64xf32>
    %171 = arith.maximumf %169, %170 : vector<8x64xf32>
    %c0_71 = arith.constant 0 : index
    %c0_72 = arith.constant 0 : index
    %c0_73 = arith.constant 0 : index
    %172 = vector.load %arg14[%c0_71, %c0_72, %c0_73] : memref<1x64x32xf32, #tpu.memory_space<vmem>>, vector<1x64x32xf32>
    %173 = vector.shape_cast %172 : vector<1x64x32xf32> to vector<64x32xf32>
    %cst_74 = arith.constant dense<0.000000e+00> : vector<8x32xf32>
    %174 = tpu.matmul %171, %173, %cst_74 {dimension_numbers = #tpu.dot_dimension_numbers<[1], [0], [0], [1], [0, 0, 1, 1], [], []>} : vector<8x64xf32>, vector<64x32xf32>, vector<8x32xf32> -> vector<8x32xf32>
    %c0_75 = arith.constant 0 : index
    %c0_76 = arith.constant 0 : index
    %c0_77 = arith.constant 0 : index
    %175 = vector.load %arg15[%c0_75, %c0_76, %c0_77] : memref<1x1x32xf32, #tpu.memory_space<vmem>>, vector<1x1x32xf32>
    %176 = vector.shape_cast %175 : vector<1x1x32xf32> to vector<1x32xf32>
    %177 = vector.broadcast %176 : vector<1x32xf32> to vector<8x32xf32>
    %178 = arith.addf %174, %177 : vector<8x32xf32>
    %179 = arith.addf %136, %178 : vector<8x32xf32>
    %c0_78 = arith.constant 0 : index
    %c0_79 = arith.constant 0 : index
    %180 = vector.load %arg17[%c0_78, %c0_79] : memref<8x32xf32, #tpu.memory_space<vmem>>, vector<8x32xf32>
    tpu.vector_store %arg17[%c0_78, %c0_79], %179 {strides = array<i32>} : memref<8x32xf32, #tpu.memory_space<vmem>>, vector<8x32xf32>,
    %c1_i32 = arith.constant 1 : i32
    %181 = arith.cmpi eq, %arg1, %c1_i32 : i32
    %182 = arith.extui %181 : i1 to i32
    %c0_i32_80 = arith.constant 0 : i32
    %183 = arith.cmpi ne, %182, %c0_i32_80 : i32
    scf.if %183 {
      %c0_81 = arith.constant 0 : index
      %c0_82 = arith.constant 0 : index
      %c0_83 = arith.constant 0 : index
      %184 = vector.load %arg16[%c0_81, %c0_82, %c0_83] : memref<1x8x32xf32, #tpu.memory_space<vmem>>, vector<1x8x32xf32>
      %185 = vector.shape_cast %184 : vector<1x8x32xf32> to vector<8x32xf32>
      %186 = vector.shape_cast %179 : vector<8x32xf32> to vector<1x8x32xf32>
      tpu.vector_store %arg16[%c0_81, %c0_82, %c0_83], %186 {strides = array<i32>} : memref<1x8x32xf32, #tpu.memory_space<vmem>>, vector<1x8x32xf32>,
    } else {
    }
    return
  }
  func.func @transform_0(%arg0: i32, %arg1: i32) -> (i32, i32, i32) {
    %c0_i32 = arith.constant 0 : i32
    %c0_i32_0 = arith.constant 0 : i32
    %c0_i32_1 = arith.constant 0 : i32
    return %arg0, %c0_i32, %c0_i32_0 : i32, i32, i32
  }
  func.func @transform_1(%arg0: i32, %arg1: i32) -> (i32, i32, i32) {
    %c0_i32 = arith.constant 0 : i32
    %c0_i32_0 = arith.constant 0 : i32
    %c0_i32_1 = arith.constant 0 : i32
    return %arg0, %c0_i32, %c0_i32_0 : i32, i32, i32
  }
  func.func @transform_2(%arg0: i32, %arg1: i32) -> (i32, i32, i32) {
    %c0_i32 = arith.constant 0 : i32
    %c0_i32_0 = arith.constant 0 : i32
    %c0_i32_1 = arith.constant 0 : i32
    return %arg1, %c0_i32, %c0_i32_0 : i32, i32, i32
  }
  func.func @transform_3(%arg0: i32, %arg1: i32) -> (i32, i32, i32) {
    %c0_i32 = arith.constant 0 : i32
    %c0_i32_0 = arith.constant 0 : i32
    %c0_i32_1 = arith.constant 0 : i32
    return %arg1, %c0_i32, %c0_i32_0 : i32, i32, i32
  }
  func.func @transform_4(%arg0: i32, %arg1: i32) -> (i32, i32, i32) {
    %c0_i32 = arith.constant 0 : i32
    %c0_i32_0 = arith.constant 0 : i32
    %c0_i32_1 = arith.constant 0 : i32
    return %arg1, %c0_i32, %c0_i32_0 : i32, i32, i32
  }
  func.func @transform_5(%arg0: i32, %arg1: i32) -> (i32, i32, i32) {
    %c0_i32 = arith.constant 0 : i32
    %c0_i32_0 = arith.constant 0 : i32
    %c0_i32_1 = arith.constant 0 : i32
    return %arg1, %c0_i32, %c0_i32_0 : i32, i32, i32
  }
  func.func @transform_6(%arg0: i32, %arg1: i32) -> (i32, i32, i32) {
    %c0_i32 = arith.constant 0 : i32
    %c0_i32_0 = arith.constant 0 : i32
    %c0_i32_1 = arith.constant 0 : i32
    return %arg1, %c0_i32, %c0_i32_0 : i32, i32, i32
  }
  func.func @transform_7(%arg0: i32, %arg1: i32) -> (i32, i32, i32) {
    %c0_i32 = arith.constant 0 : i32
    %c0_i32_0 = arith.constant 0 : i32
    %c0_i32_1 = arith.constant 0 : i32
    return %arg1, %c0_i32, %c0_i32_0 : i32, i32, i32
  }
  func.func @transform_8(%arg0: i32, %arg1: i32) -> (i32, i32, i32) {
    %c0_i32 = arith.constant 0 : i32
    %c0_i32_0 = arith.constant 0 : i32
    %c0_i32_1 = arith.constant 0 : i32
    return %arg1, %c0_i32, %c0_i32_0 : i32, i32, i32
  }
  func.func @transform_9(%arg0: i32, %arg1: i32) -> (i32, i32, i32) {
    %c0_i32 = arith.constant 0 : i32
    %c0_i32_0 = arith.constant 0 : i32
    %c0_i32_1 = arith.constant 0 : i32
    return %arg1, %c0_i32, %c0_i32_0 : i32, i32, i32
  }
  func.func @transform_10(%arg0: i32, %arg1: i32) -> (i32, i32, i32) {
    %c0_i32 = arith.constant 0 : i32
    %c0_i32_0 = arith.constant 0 : i32
    %c0_i32_1 = arith.constant 0 : i32
    return %arg1, %c0_i32, %c0_i32_0 : i32, i32, i32
  }
  func.func @transform_11(%arg0: i32, %arg1: i32) -> (i32, i32, i32) {
    %c0_i32 = arith.constant 0 : i32
    %c0_i32_0 = arith.constant 0 : i32
    %c0_i32_1 = arith.constant 0 : i32
    return %arg1, %c0_i32, %c0_i32_0 : i32, i32, i32
  }
  func.func @transform_12(%arg0: i32, %arg1: i32) -> (i32, i32, i32) {
    %c0_i32 = arith.constant 0 : i32
    %c0_i32_0 = arith.constant 0 : i32
    %c0_i32_1 = arith.constant 0 : i32
    return %arg1, %c0_i32, %c0_i32_0 : i32, i32, i32
  }
  func.func @transform_13(%arg0: i32, %arg1: i32) -> (i32, i32, i32) {
    %c0_i32 = arith.constant 0 : i32
    %c0_i32_0 = arith.constant 0 : i32
    %c0_i32_1 = arith.constant 0 : i32
    return %arg1, %c0_i32, %c0_i32_0 : i32, i32, i32
  }
  func.func @transform_14(%arg0: i32, %arg1: i32) -> (i32, i32, i32) {
    %c0_i32 = arith.constant 0 : i32
    %c0_i32_0 = arith.constant 0 : i32
    %c0_i32_1 = arith.constant 0 : i32
    return %arg0, %c0_i32, %c0_i32_0 : i32, i32, i32
  }
}

</mosaic_0001>

<llo_original>
// kernel: decoder_stack.1
$region0: #{decoder_stack.1}
  #allocation0 [shape = 'u32[]', space=smem, size = 0x4, offset = 0x4, fixed_abs, tag = 'smem constant byte address 0x4 - core index']
  #allocation1 [shape = 'u32[72,128]{1,0:T(1,128)}', space=vmem, size = 0x9000, scoped, tag = 'internal scratch']
  #allocation2 [shape = 'f32[8,32]{1,0:T(8,128)}', space=vmem, size = 0x1000, scoped, tag = 'scratch operand']
  %s0 = inlined_call_operand.vmem [shape: f32[2,8,32], index: 0, kind: input, shape index: {}]
  %s1 = inlined_call_operand.vmem [shape: f32[2,1,8], index: 1, kind: input, shape index: {}]
  %s2 = inlined_call_operand.vmem [shape: f32[2,32,96], index: 2, kind: input, shape index: {}]
  %s3 = inlined_call_operand.vmem [shape: f32[2,1,96], index: 3, kind: input, shape index: {}]
  %s4 = inlined_call_operand.vmem [shape: f32[2,32,32], index: 4, kind: input, shape index: {}]
  %s5 = inlined_call_operand.vmem [shape: f32[2,1,32], index: 5, kind: input, shape index: {}]
  %s6 = inlined_call_operand.vmem [shape: f32[2,1,32], index: 6, kind: input, shape index: {}]
  %s7 = inlined_call_operand.vmem [shape: f32[2,1,32], index: 7, kind: input, shape index: {}]
  %s8 = inlined_call_operand.vmem [shape: f32[2,1,32], index: 8, kind: input, shape index: {}]
  %s9 = inlined_call_operand.vmem [shape: f32[2,1,32], index: 9, kind: input, shape index: {}]
  %s10 = inlined_call_operand.vmem [shape: f32[2,32,64], index: 10, kind: input, shape index: {}]
  %s11 = inlined_call_operand.vmem [shape: f32[2,1,64], index: 11, kind: input, shape index: {}]
  %s12 = inlined_call_operand.vmem [shape: f32[2,64,32], index: 12, kind: input, shape index: {}]
  %s13 = inlined_call_operand.vmem [shape: f32[2,1,32], index: 13, kind: input, shape index: {}]
  %s14 = inlined_call_operand.hbm [shape: f32[2,8,32], index: 14, kind: output, shape index: {}]
  %s15 = sld [smem:[#allocation0]]
  $region97: #{decoder_stack.1} parent=0
    _
  %s17 = ssub.s32 1, %s15
  %s18 = scalar_select 0, %s17, %s15
  $region1: #{decoder_stack.1} parent=0
    #allocation3 [shape = 'u8[8192]{0}', space=vmem, size = 0x2000, scoped, tag = 'output window, operand 0']
    #allocation4 [shape = 's32[2]{0}', space=sflag, size = 0x8, scoped, tag = 'scoped memory for decoder_stack.1']
    %19 = vsyncpa [#allocation4], 0
    %s20 = scalar_lea.sflag [#allocation4], 1
    %21 = vsyncpa %s20, 0
    loop: start=0, step=1, limit=6
    $region2: #{decoder_stack.1} parent=1 // loop_pre_header
      _
    $region3: #{decoder_stack.1} parent=1 // loop_header
      %s23 = sphi 0, %s27
      %p24 = scmp.ge.s32.totalorder %s23, 6
      %s30 = sphi 0, %s42
      %s31 = sphi 0, %s38
      %s32 = sphi 0, %s30
      %s33 = sphi 0, %s31
      %s34 = sphi 0, %s32
      %s35 = sphi 0, %s33
      %s45 = sphi 0, %s47
      %s48 = sphi 0, %s45
      %s49 = sphi 0, %s48
      %s65 = sphi 0, %s49
      %s71 = sphi 0, %s73
      %s74 = sphi 0, %s71
      %s75 = sphi 0, %s74
      %s91 = sphi 0, %s75
      %s97 = sphi 0, %s99
      %s100 = sphi 0, %s97
      %s101 = sphi 0, %s100
      %s117 = sphi 0, %s101
      %s123 = sphi 0, %s125
      %s126 = sphi 0, %s123
      %s127 = sphi 0, %s126
      %s143 = sphi 0, %s127
      %s149 = sphi 0, %s151
      %s152 = sphi 0, %s149
      %s153 = sphi 0, %s152
      %s169 = sphi 0, %s153
      %s175 = sphi 0, %s177
      %s178 = sphi 0, %s175
      %s179 = sphi 0, %s178
      %s195 = sphi 0, %s179
      %s201 = sphi 0, %s203
      %s204 = sphi 0, %s201
      %s205 = sphi 0, %s204
      %s221 = sphi 0, %s205
      %s227 = sphi 0, %s229
      %s230 = sphi 0, %s227
      %s231 = sphi 0, %s230
      %s247 = sphi 0, %s231
      %s253 = sphi 0, %s255
      %s256 = sphi 0, %s253
      %s257 = sphi 0, %s256
      %s273 = sphi 0, %s257
      %s279 = sphi 0, %s281
      %s282 = sphi 0, %s279
      %s283 = sphi 0, %s282
      %s299 = sphi 0, %s283
      %s305 = sphi 0, %s307
      %s308 = sphi 0, %s305
      %s309 = sphi 0, %s308
      %s325 = sphi 0, %s309
      %s331 = sphi 0, %s333
      %s334 = sphi 0, %s331
      %s335 = sphi 0, %s334
      %s351 = sphi 0, %s335
      %s357 = sphi 0, %s359
      %s360 = sphi 0, %s357
      %s361 = sphi 0, %s360
      %s377 = sphi 0, %s361
      %s383 = sphi 0, %s385
      %s386 = sphi 0, %s383
      %s387 = sphi 0, %s386
      %s403 = sphi 0, %s387
      %s409 = sphi 0, %s411
      %s412 = sphi 0, %s409
      %s413 = sphi 0, %s412
      %s429 = sphi 0, %s413
    $region4: #{decoder_stack.1} parent=1 // loop_header_branch
      %26 = sbr.rel (%p24) target = $region8
    $region5: #{decoder_stack.1} parent=1 // loop_body
      %s28 = ssub.s32 %s23, 1
      %s29 = ssub.s32 %s23, 2
      %s36 = sadd.s32 1, %s31
      %p37 = scmp.ge.s32.totalorder %s36, 2
      %s38 = scalar_select %p37, 0, %s36
      %s39 = sadd.s32 1, %s30
      %s40 = scalar_select %p37, %s39, %s30
      %p41 = scmp.ge.s32.totalorder %s40, 2
      %s42 = scalar_select %p41, 0, %s40
      %s43 = ssub.s32 %s30, %s42
      %p44 = scmp.eq.s32.totalorder %s43, 0
      %s46 = sadd.s32 %s45, 1
      %s47 = scalar_select %p44, %s45, %s46
      %p50 = pneg %p44
      %p51 = scmp.eq.s32.totalorder %s23, 3
      %p52 = por %p50, %p51
      %p53 = scmp.ne.s32.totalorder %s45, %s48
      %p54 = scmp.eq.s32.totalorder %s23, 0
      %p55 = por %p53, %p54
      %p56 = scmp.ne.s32.totalorder %s45, %s48
      %p57 = scmp.eq.s32.totalorder %s28, 3
      %p58 = por %p56, %p57
      %p59 = scmp.ne.s32.totalorder %s48, %s49
      %p60 = scmp.eq.s32.totalorder %s28, 0
      %p61 = por %p59, %p60
      %p62 = scmp.ne.s32.totalorder %s48, %s49
      %p63 = scmp.eq.s32.totalorder %s29, 3
      %p64 = por %p62, %p63
      %p66 = scmp.ne.s32.totalorder %s49, %s65
      %p67 = scmp.eq.s32.totalorder %s29, 0
      %p68 = por %p66, %p67
      %s69 = ssub.s32 %s30, %s42
      %p70 = scmp.eq.s32.totalorder %s69, 0
      %s72 = sadd.s32 %s71, 1
      %s73 = scalar_select %p70, %s71, %s72
      %p76 = pneg %p70
      %p77 = scmp.eq.s32.totalorder %s23, 3
      %p78 = por %p76, %p77
      %p79 = scmp.ne.s32.totalorder %s71, %s74
      %p80 = scmp.eq.s32.totalorder %s23, 0
      %p81 = por %p79, %p80
      %p82 = scmp.ne.s32.totalorder %s71, %s74
      %p83 = scmp.eq.s32.totalorder %s28, 3
      %p84 = por %p82, %p83
      %p85 = scmp.ne.s32.totalorder %s74, %s75
      %p86 = scmp.eq.s32.totalorder %s28, 0
      %p87 = por %p85, %p86
      %p88 = scmp.ne.s32.totalorder %s74, %s75
      %p89 = scmp.eq.s32.totalorder %s29, 3
      %p90 = por %p88, %p89
      %p92 = scmp.ne.s32.totalorder %s75, %s91
      %p93 = scmp.eq.s32.totalorder %s29, 0
      %p94 = por %p92, %p93
      %s95 = ssub.s32 %s31, %s38
      %p96 = scmp.eq.s32.totalorder %s95, 0
      %s98 = sadd.s32 %s97, 1
      %s99 = scalar_select %p96, %s97, %s98
      %p102 = pneg %p96
      %p103 = scmp.eq.s32.totalorder %s23, 3
      %p104 = por %p102, %p103
      %p105 = scmp.ne.s32.totalorder %s97, %s100
      %p106 = scmp.eq.s32.totalorder %s23, 0
      %p107 = por %p105, %p106
      %p108 = scmp.ne.s32.totalorder %s97, %s100
      %p109 = scmp.eq.s32.totalorder %s28, 3
      %p110 = por %p108, %p109
      %p111 = scmp.ne.s32.totalorder %s100, %s101
      %p112 = scmp.eq.s32.totalorder %s28, 0
      %p113 = por %p111, %p112
      %p114 = scmp.ne.s32.totalorder %s100, %s101
      %p115 = scmp.eq.s32.totalorder %s29, 3
      %p116 = por %p114, %p115
      %p118 = scmp.ne.s32.totalorder %s101, %s117
      %p119 = scmp.eq.s32.totalorder %s29, 0
      %p120 = por %p118, %p119
      %s121 = ssub.s32 %s31, %s38
      %p122 = scmp.eq.s32.totalorder %s121, 0
      %s124 = sadd.s32 %s123, 1
      %s125 = scalar_select %p122, %s123, %s124
      %p128 = pneg %p122
      %p129 = scmp.eq.s32.totalorder %s23, 3
      %p130 = por %p128, %p129
      %p131 = scmp.ne.s32.totalorder %s123, %s126
      %p132 = scmp.eq.s32.totalorder %s23, 0
      %p133 = por %p131, %p132
      %p134 = scmp.ne.s32.totalorder %s123, %s126
      %p135 = scmp.eq.s32.totalorder %s28, 3
      %p136 = por %p134, %p135
      %p137 = scmp.ne.s32.totalorder %s126, %s127
      %p138 = scmp.eq.s32.totalorder %s28, 0
      %p139 = por %p137, %p138
      %p140 = scmp.ne.s32.totalorder %s126, %s127
      %p141 = scmp.eq.s32.totalorder %s29, 3
      %p142 = por %p140, %p141
      %p144 = scmp.ne.s32.totalorder %s127, %s143
      %p145 = scmp.eq.s32.totalorder %s29, 0
      %p146 = por %p144, %p145
      %s147 = ssub.s32 %s31, %s38
      %p148 = scmp.eq.s32.totalorder %s147, 0
      %s150 = sadd.s32 %s149, 1
      %s151 = scalar_select %p148, %s149, %s150
      %p154 = pneg %p148
      %p155 = scmp.eq.s32.totalorder %s23, 3
      %p156 = por %p154, %p155
      %p157 = scmp.ne.s32.totalorder %s149, %s152
      %p158 = scmp.eq.s32.totalorder %s23, 0
      %p159 = por %p157, %p158
      %p160 = scmp.ne.s32.totalorder %s149, %s152
      %p161 = scmp.eq.s32.totalorder %s28, 3
      %p162 = por %p160, %p161
      %p163 = scmp.ne.s32.totalorder %s152, %s153
      %p164 = scmp.eq.s32.totalorder %s28, 0
      %p165 = por %p163, %p164
      %p166 = scmp.ne.s32.totalorder %s152, %s153
      %p167 = scmp.eq.s32.totalorder %s29, 3
      %p168 = por %p166, %p167
      %p170 = scmp.ne.s32.totalorder %s153, %s169
      %p171 = scmp.eq.s32.totalorder %s29, 0
      %p172 = por %p170, %p171
      %s173 = ssub.s32 %s31, %s38
      %p174 = scmp.eq.s32.totalorder %s173, 0
      %s176 = sadd.s32 %s175, 1
      %s177 = scalar_select %p174, %s175, %s176
      %p180 = pneg %p174
      %p181 = scmp.eq.s32.totalorder %s23, 3
      %p182 = por %p180, %p181
      %p183 = scmp.ne.s32.totalorder %s175, %s178
      %p184 = scmp.eq.s32.totalorder %s23, 0
      %p185 = por %p183, %p184
      %p186 = scmp.ne.s32.totalorder %s175, %s178
      %p187 = scmp.eq.s32.totalorder %s28, 3
      %p188 = por %p186, %p187
      %p189 = scmp.ne.s32.totalorder %s178, %s179
      %p190 = scmp.eq.s32.totalorder %s28, 0
      %p191 = por %p189, %p190
      %p192 = scmp.ne.s32.totalorder %s178, %s179
      %p193 = scmp.eq.s32.totalorder %s29, 3
      %p194 = por %p192, %p193
      %p196 = scmp.ne.s32.totalorder %s179, %s195
      %p197 = scmp.eq.s32.totalorder %s29, 0
      %p198 = por %p196, %p197
      %s199 = ssub.s32 %s31, %s38
      %p200 = scmp.eq.s32.totalorder %s199, 0
      %s202 = sadd.s32 %s201, 1
      %s203 = scalar_select %p200, %s201, %s202
      %p206 = pneg %p200
      %p207 = scmp.eq.s32.totalorder %s23, 3
      %p208 = por %p206, %p207
      %p209 = scmp.ne.s32.totalorder %s201, %s204
      %p210 = scmp.eq.s32.totalorder %s23, 0
      %p211 = por %p209, %p210
      %p212 = scmp.ne.s32.totalorder %s201, %s204
      %p213 = scmp.eq.s32.totalorder %s28, 3
      %p214 = por %p212, %p213
      %p215 = scmp.ne.s32.totalorder %s204, %s205
      %p216 = scmp.eq.s32.totalorder %s28, 0
      %p217 = por %p215, %p216
      %p218 = scmp.ne.s32.totalorder %s204, %s205
      %p219 = scmp.eq.s32.totalorder %s29, 3
      %p220 = por %p218, %p219
      %p222 = scmp.ne.s32.totalorder %s205, %s221
      %p223 = scmp.eq.s32.totalorder %s29, 0
      %p224 = por %p222, %p223
      %s225 = ssub.s32 %s31, %s38
      %p226 = scmp.eq.s32.totalorder %s225, 0
      %s228 = sadd.s32 %s227, 1
      %s229 = scalar_select %p226, %s227, %s228
      %p232 = pneg %p226
      %p233 = scmp.eq.s32.totalorder %s23, 3
      %p234 = por %p232, %p233
      %p235 = scmp.ne.s32.totalorder %s227, %s230
      %p236 = scmp.eq.s32.totalorder %s23, 0
      %p237 = por %p235, %p236
      %p238 = scmp.ne.s32.totalorder %s227, %s230
      %p239 = scmp.eq.s32.totalorder %s28, 3
      %p240 = por %p238, %p239
      %p241 = scmp.ne.s32.totalorder %s230, %s231
      %p242 = scmp.eq.s32.totalorder %s28, 0
      %p243 = por %p241, %p242
      %p244 = scmp.ne.s32.totalorder %s230, %s231
      %p245 = scmp.eq.s32.totalorder %s29, 3
      %p246 = por %p244, %p245
      %p248 = scmp.ne.s32.totalorder %s231, %s247
      %p249 = scmp.eq.s32.totalorder %s29, 0
      %p250 = por %p248, %p249
      %s251 = ssub.s32 %s31, %s38
      %p252 = scmp.eq.s32.totalorder %s251, 0
      %s254 = sadd.s32 %s253, 1
      %s255 = scalar_select %p252, %s253, %s254
      %p258 = pneg %p252
      %p259 = scmp.eq.s32.totalorder %s23, 3
      %p260 = por %p258, %p259
      %p261 = scmp.ne.s32.totalorder %s253, %s256
      %p262 = scmp.eq.s32.totalorder %s23, 0
      %p263 = por %p261, %p262
      %p264 = scmp.ne.s32.totalorder %s253, %s256
      %p265 = scmp.eq.s32.totalorder %s28, 3
      %p266 = por %p264, %p265
      %p267 = scmp.ne.s32.totalorder %s256, %s257
      %p268 = scmp.eq.s32.totalorder %s28, 0
      %p269 = por %p267, %p268
      %p270 = scmp.ne.s32.totalorder %s256, %s257
      %p271 = scmp.eq.s32.totalorder %s29, 3
      %p272 = por %p270, %p271
      %p274 = scmp.ne.s32.totalorder %s257, %s273
      %p275 = scmp.eq.s32.totalorder %s29, 0
      %p276 = por %p274, %p275
      %s277 = ssub.s32 %s31, %s38
      %p278 = scmp.eq.s32.totalorder %s277, 0
      %s280 = sadd.s32 %s279, 1
      %s281 = scalar_select %p278, %s279, %s280
      %p284 = pneg %p278
      %p285 = scmp.eq.s32.totalorder %s23, 3
      %p286 = por %p284, %p285
      %p287 = scmp.ne.s32.totalorder %s279, %s282
      %p288 = scmp.eq.s32.totalorder %s23, 0
      %p289 = por %p287, %p288
      %p290 = scmp.ne.s32.totalorder %s279, %s282
      %p291 = scmp.eq.s32.totalorder %s28, 3
      %p292 = por %p290, %p291
      %p293 = scmp.ne.s32.totalorder %s282, %s283
      %p294 = scmp.eq.s32.totalorder %s28, 0
      %p295 = por %p293, %p294
      %p296 = scmp.ne.s32.totalorder %s282, %s283
      %p297 = scmp.eq.s32.totalorder %s29, 3
      %p298 = por %p296, %p297
      %p300 = scmp.ne.s32.totalorder %s283, %s299
      %p301 = scmp.eq.s32.totalorder %s29, 0
      %p302 = por %p300, %p301
      %s303 = ssub.s32 %s31, %s38
      %p304 = scmp.eq.s32.totalorder %s303, 0
      %s306 = sadd.s32 %s305, 1
      %s307 = scalar_select %p304, %s305, %s306
      %p310 = pneg %p304
      %p311 = scmp.eq.s32.totalorder %s23, 3
      %p312 = por %p310, %p311
      %p313 = scmp.ne.s32.totalorder %s305, %s308
      %p314 = scmp.eq.s32.totalorder %s23, 0
      %p315 = por %p313, %p314
      %p316 = scmp.ne.s32.totalorder %s305, %s308
      %p317 = scmp.eq.s32.totalorder %s28, 3
      %p318 = por %p316, %p317
      %p319 = scmp.ne.s32.totalorder %s308, %s309
      %p320 = scmp.eq.s32.totalorder %s28, 0
      %p321 = por %p319, %p320
      %p322 = scmp.ne.s32.totalorder %s308, %s309
      %p323 = scmp.eq.s32.totalorder %s29, 3
      %p324 = por %p322, %p323
      %p326 = scmp.ne.s32.totalorder %s309, %s325
      %p327 = scmp.eq.s32.totalorder %s29, 0
      %p328 = por %p326, %p327
      %s329 = ssub.s32 %s31, %s38
      %p330 = scmp.eq.s32.totalorder %s329, 0
      %s332 = sadd.s32 %s331, 1
      %s333 = scalar_select %p330, %s331, %s332
      %p336 = pneg %p330
      %p337 = scmp.eq.s32.totalorder %s23, 3
      %p338 = por %p336, %p337
      %p339 = scmp.ne.s32.totalorder %s331, %s334
      %p340 = scmp.eq.s32.totalorder %s23, 0
      %p341 = por %p339, %p340
      %p342 = scmp.ne.s32.totalorder %s331, %s334
      %p343 = scmp.eq.s32.totalorder %s28, 3
      %p344 = por %p342, %p343
      %p345 = scmp.ne.s32.totalorder %s334, %s335
      %p346 = scmp.eq.s32.totalorder %s28, 0
      %p347 = por %p345, %p346
      %p348 = scmp.ne.s32.totalorder %s334, %s335
      %p349 = scmp.eq.s32.totalorder %s29, 3
      %p350 = por %p348, %p349
      %p352 = scmp.ne.s32.totalorder %s335, %s351
      %p353 = scmp.eq.s32.totalorder %s29, 0
      %p354 = por %p352, %p353
      %s355 = ssub.s32 %s31, %s38
      %p356 = scmp.eq.s32.totalorder %s355, 0
      %s358 = sadd.s32 %s357, 1
      %s359 = scalar_select %p356, %s357, %s358
      %p362 = pneg %p356
      %p363 = scmp.eq.s32.totalorder %s23, 3
      %p364 = por %p362, %p363
      %p365 = scmp.ne.s32.totalorder %s357, %s360
      %p366 = scmp.eq.s32.totalorder %s23, 0
      %p367 = por %p365, %p366
      %p368 = scmp.ne.s32.totalorder %s357, %s360
      %p369 = scmp.eq.s32.totalorder %s28, 3
      %p370 = por %p368, %p369
      %p371 = scmp.ne.s32.totalorder %s360, %s361
      %p372 = scmp.eq.s32.totalorder %s28, 0
      %p373 = por %p371, %p372
      %p374 = scmp.ne.s32.totalorder %s360, %s361
      %p375 = scmp.eq.s32.totalorder %s29, 3
      %p376 = por %p374, %p375
      %p378 = scmp.ne.s32.totalorder %s361, %s377
      %p379 = scmp.eq.s32.totalorder %s29, 0
      %p380 = por %p378, %p379
      %s381 = ssub.s32 %s31, %s38
      %p382 = scmp.eq.s32.totalorder %s381, 0
      %s384 = sadd.s32 %s383, 1
      %s385 = scalar_select %p382, %s383, %s384
      %p388 = pneg %p382
      %p389 = scmp.eq.s32.totalorder %s23, 3
      %p390 = por %p388, %p389
      %p391 = scmp.ne.s32.totalorder %s383, %s386
      %p392 = scmp.eq.s32.totalorder %s23, 0
      %p393 = por %p391, %p392
      %p394 = scmp.ne.s32.totalorder %s383, %s386
      %p395 = scmp.eq.s32.totalorder %s28, 3
      %p396 = por %p394, %p395
      %p397 = scmp.ne.s32.totalorder %s386, %s387
      %p398 = scmp.eq.s32.totalorder %s28, 0
      %p399 = por %p397, %p398
      %p400 = scmp.ne.s32.totalorder %s386, %s387
      %p401 = scmp.eq.s32.totalorder %s29, 3
      %p402 = por %p400, %p401
      %p404 = scmp.ne.s32.totalorder %s387, %s403
      %p405 = scmp.eq.s32.totalorder %s29, 0
      %p406 = por %p404, %p405
      %s407 = ssub.s32 %s30, %s42
      %p408 = scmp.eq.s32.totalorder %s407, 0
      %s410 = sadd.s32 %s409, 1
      %s411 = scalar_select %p408, %s409, %s410
      %p414 = pneg %p408
      %p415 = scmp.eq.s32.totalorder %s23, 3
      %p416 = por %p414, %p415
      %p417 = scmp.ne.s32.totalorder %s409, %s412
      %p418 = scmp.eq.s32.totalorder %s23, 0
      %p419 = por %p417, %p418
      %p420 = scmp.ne.s32.totalorder %s409, %s412
      %p421 = scmp.eq.s32.totalorder %s28, 3
      %p422 = por %p420, %p421
      %p423 = scmp.ne.s32.totalorder %s412, %s413
      %p424 = scmp.eq.s32.totalorder %s28, 0
      %p425 = por %p423, %p424
      %p426 = scmp.ne.s32.totalorder %s412, %s413
      %p427 = scmp.eq.s32.totalorder %s29, 3
      %p428 = por %p426, %p427
      %p430 = scmp.ne.s32.totalorder %s413, %s429
      %p431 = scmp.eq.s32.totalorder %s29, 0
      %p432 = por %p430, %p431
      %p433 = scmp.le.s32.totalorder 1, %s23
      %p434 = scmp.lt.s32.totalorder %s23, 5
      %p435 = pnand %p433, %p434
      %p436 = pneg %p435
      // Predicated region
      $region9: #{decoder_stack.1} parent=5 // pred_check
        _
      $region10: #{decoder_stack.1} parent=5 // pred_check_branch
        %438 = sbr.rel (%p435) target = $region12
      $region11: #{decoder_stack.1} parent=5 // pred_region
        %s439 = ssub.s32 %s23, 1
      $region12: #{decoder_stack.1} parent=5 // pred_fallthru
        _
      %p440 = scmp.lt.s32.totalorder %s23, 4
      // Predicated region
      $region13: #{decoder_stack.1} parent=5 // pred_check
        %p441 = pneg %p440
      $region14: #{decoder_stack.1} parent=5 // pred_check_branch
        %443 = sbr.rel (%p441) target = $region16
      $region15: #{decoder_stack.1} parent=5 // pred_region
        // Predicated region
        $region17: #{decoder_stack.1} parent=15 // pred_check
          %p444 = pneg %p55
        $region18: #{decoder_stack.1} parent=15 // pred_check_branch
          %446 = sbr.rel (%p444) target = $region20
        $region19: #{decoder_stack.1} parent=15 // pred_region
          %p447 = scmp.lt.s32.totalorder %s30, 1
          %s448 = scalar_select %p447, %s30, 1
          %s449 = smul.addr %s448, 8
          %s450 = scalar_lea.vmem %s0, %s449
        $region20: #{decoder_stack.1} parent=15 // pred_fallthru
          _
        // Predicated region
        $region21: #{decoder_stack.1} parent=15 // pred_check
          %p451 = pneg %p81
        $region22: #{decoder_stack.1} parent=15 // pred_check_branch
          %453 = sbr.rel (%p451) target = $region24
        $region23: #{decoder_stack.1} parent=15 // pred_region
          %p454 = scmp.lt.s32.totalorder %s30, 1
          %s455 = scalar_select %p454, %s30, 1
          %s456 = scalar_lea.vmem %s1, %s455
        $region24: #{decoder_stack.1} parent=15 // pred_fallthru
          _
        // Predicated region
        $region25: #{decoder_stack.1} parent=15 // pred_check
          %p457 = pneg %p107
        $region26: #{decoder_stack.1} parent=15 // pred_check_branch
          %459 = sbr.rel (%p457) target = $region28
        $region27: #{decoder_stack.1} parent=15 // pred_region
          %p460 = scmp.lt.s32.totalorder %s31, 1
          %s461 = scalar_select %p460, %s31, 1
          %s462 = smul.addr %s461, 4
          %s463 = smul.addr %s462, 8
          %s464 = scalar_lea.vmem %s2, %s463
        $region28: #{decoder_stack.1} parent=15 // pred_fallthru
          _
        // Predicated region
        $region29: #{decoder_stack.1} parent=15 // pred_check
          %p465 = pneg %p133
        $region30: #{decoder_stack.1} parent=15 // pred_check_branch
          %467 = sbr.rel (%p465) target = $region32
        $region31: #{decoder_stack.1} parent=15 // pred_region
          %p468 = scmp.lt.s32.totalorder %s31, 1
          %s469 = scalar_select %p468, %s31, 1
          %s470 = scalar_lea.vmem %s3, %s469
        $region32: #{decoder_stack.1} parent=15 // pred_fallthru
          _
        // Predicated region
        $region33: #{decoder_stack.1} parent=15 // pred_check
          %p471 = pneg %p159
        $region34: #{decoder_stack.1} parent=15 // pred_check_branch
          %473 = sbr.rel (%p471) target = $region36
        $region35: #{decoder_stack.1} parent=15 // pred_region
          %p474 = scmp.lt.s32.totalorder %s31, 1
          %s475 = scalar_select %p474, %s31, 1
          %s476 = smul.addr %s475, 4
          %s477 = smul.addr %s476, 8
          %s478 = scalar_lea.vmem %s4, %s477
        $region36: #{decoder_stack.1} parent=15 // pred_fallthru
          _
        // Predicated region
        $region37: #{decoder_stack.1} parent=15 // pred_check
          %p479 = pneg %p185
        $region38: #{decoder_stack.1} parent=15 // pred_check_branch
          %481 = sbr.rel (%p479) target = $region40
        $region39: #{decoder_stack.1} parent=15 // pred_region
          %p482 = scmp.lt.s32.totalorder %s31, 1
          %s483 = scalar_select %p482, %s31, 1
          %s484 = scalar_lea.vmem %s5, %s483
        $region40: #{decoder_stack.1} parent=15 // pred_fallthru
          _
        // Predicated region
        $region41: #{decoder_stack.1} parent=15 // pred_check
          %p485 = pneg %p211
        $region42: #{decoder_stack.1} parent=15 // pred_check_branch
          %487 = sbr.rel (%p485) target = $region44
        $region43: #{decoder_stack.1} parent=15 // pred_region
          %p488 = scmp.lt.s32.totalorder %s31, 1
          %s489 = scalar_select %p488, %s31, 1
          %s490 = scalar_lea.vmem %s6, %s489
        $region44: #{decoder_stack.1} parent=15 // pred_fallthru
          _
        // Predicated region
        $region45: #{decoder_stack.1} parent=15 // pred_check
          %p491 = pneg %p237
        $region46: #{decoder_stack.1} parent=15 // pred_check_branch
          %493 = sbr.rel (%p491) target = $region48
        $region47: #{decoder_stack.1} parent=15 // pred_region
          %p494 = scmp.lt.s32.totalorder %s31, 1
          %s495 = scalar_select %p494, %s31, 1
          %s496 = scalar_lea.vmem %s7, %s495
        $region48: #{decoder_stack.1} parent=15 // pred_fallthru
          _
        // Predicated region
        $region49: #{decoder_stack.1} parent=15 // pred_check
          %p497 = pneg %p263
        $region50: #{decoder_stack.1} parent=15 // pred_check_branch
          %499 = sbr.rel (%p497) target = $region52
        $region51: #{decoder_stack.1} parent=15 // pred_region
          %p500 = scmp.lt.s32.totalorder %s31, 1
          %s501 = scalar_select %p500, %s31, 1
          %s502 = scalar_lea.vmem %s8, %s501
        $region52: #{decoder_stack.1} parent=15 // pred_fallthru
          _
        // Predicated region
        $region53: #{decoder_stack.1} parent=15 // pred_check
          %p503 = pneg %p289
        $region54: #{decoder_stack.1} parent=15 // pred_check_branch
          %505 = sbr.rel (%p503) target = $region56
        $region55: #{decoder_stack.1} parent=15 // pred_region
          %p506 = scmp.lt.s32.totalorder %s31, 1
          %s507 = scalar_select %p506, %s31, 1
          %s508 = scalar_lea.vmem %s9, %s507
        $region56: #{decoder_stack.1} parent=15 // pred_fallthru
          _
        // Predicated region
        $region57: #{decoder_stack.1} parent=15 // pred_check
          %p509 = pneg %p315
        $region58: #{decoder_stack.1} parent=15 // pred_check_branch
          %511 = sbr.rel (%p509) target = $region60
        $region59: #{decoder_stack.1} parent=15 // pred_region
          %p512 = scmp.lt.s32.totalorder %s31, 1
          %s513 = scalar_select %p512, %s31, 1
          %s514 = smul.addr %s513, 4
          %s515 = smul.addr %s514, 8
          %s516 = scalar_lea.vmem %s10, %s515
        $region60: #{decoder_stack.1} parent=15 // pred_fallthru
          _
        // Predicated region
        $region61: #{decoder_stack.1} parent=15 // pred_check
          %p517 = pneg %p341
        $region62: #{decoder_stack.1} parent=15 // pred_check_branch
          %519 = sbr.rel (%p517) target = $region64
        $region63: #{decoder_stack.1} parent=15 // pred_region
          %p520 = scmp.lt.s32.totalorder %s31, 1
          %s521 = scalar_select %p520, %s31, 1
          %s522 = scalar_lea.vmem %s11, %s521
        $region64: #{decoder_stack.1} parent=15 // pred_fallthru
          _
        // Predicated region
        $region65: #{decoder_stack.1} parent=15 // pred_check
          %p523 = pneg %p367
        $region66: #{decoder_stack.1} parent=15 // pred_check_branch
          %525 = sbr.rel (%p523) target = $region68
        $region67: #{decoder_stack.1} parent=15 // pred_region
          %p526 = scmp.lt.s32.totalorder %s31, 1
          %s527 = scalar_select %p526, %s31, 1
          %s528 = smul.addr %s527, 8
          %s529 = smul.addr %s528, 8
          %s530 = scalar_lea.vmem %s12, %s529
        $region68: #{decoder_stack.1} parent=15 // pred_fallthru
          _
        // Predicated region
        $region69: #{decoder_stack.1} parent=15 // pred_check
          %p531 = pneg %p393
        $region70: #{decoder_stack.1} parent=15 // pred_check_branch
          %533 = sbr.rel (%p531) target = $region72
        $region71: #{decoder_stack.1} parent=15 // pred_region
          %p534 = scmp.lt.s32.totalorder %s31, 1
          %s535 = scalar_select %p534, %s31, 1
          %s536 = scalar_lea.vmem %s13, %s535
        $region72: #{decoder_stack.1} parent=15 // pred_fallthru
          _
      $region16: #{decoder_stack.1} parent=5 // pred_fallthru
        _
      %p537 = scmp.le.s32.totalorder 1, %s23
      %p538 = scmp.lt.s32.totalorder %s23, 5
      %p539 = pnand %p537, %p538
      %p540 = pneg %p539
      // Predicated region
      $region73: #{decoder_stack.1} parent=5 // pred_check
        _
      $region74: #{decoder_stack.1} parent=5 // pred_check_branch
        %542 = sbr.rel (%p539) target = $region76
      $region75: #{decoder_stack.1} parent=5 // pred_region
        %s543 = ssub.s32 %s23, 1
        %p544 = scmp.lt.s32.totalorder %s32, 1
        %s545 = scalar_select %p544, %s32, 1
        %s546 = smul.addr %s545, 8
        %s547 = scalar_lea.vmem %s0, %s546
        %p548 = pneg %p61
        %p549 = pneg %p58
        %p550 = scmp.lt.s32.totalorder %s32, 1
        %s551 = scalar_select %p550, %s32, 1
        %s552 = scalar_lea.vmem %s1, %s551
        %p553 = pneg %p87
        %p554 = pneg %p84
        %p555 = scmp.lt.s32.totalorder %s33, 1
        %s556 = scalar_select %p555, %s33, 1
        %s557 = smul.addr %s556, 4
        %s558 = smul.addr %s557, 8
        %s559 = scalar_lea.vmem %s2, %s558
        %p560 = pneg %p113
        %p561 = pneg %p110
        %p562 = scmp.lt.s32.totalorder %s33, 1
        %s563 = scalar_select %p562, %s33, 1
        %s564 = scalar_lea.vmem %s3, %s563
        %p565 = pneg %p139
        %p566 = pneg %p136
        %p567 = scmp.lt.s32.totalorder %s33, 1
        %s568 = scalar_select %p567, %s33, 1
        %s569 = smul.addr %s568, 4
        %s570 = smul.addr %s569, 8
        %s571 = scalar_lea.vmem %s4, %s570
        %p572 = pneg %p165
        %p573 = pneg %p162
        %p574 = scmp.lt.s32.totalorder %s33, 1
        %s575 = scalar_select %p574, %s33, 1
        %s576 = scalar_lea.vmem %s5, %s575
        %p577 = pneg %p191
        %p578 = pneg %p188
        %p579 = scmp.lt.s32.totalorder %s33, 1
        %s580 = scalar_select %p579, %s33, 1
        %s581 = scalar_lea.vmem %s6, %s580
        %p582 = pneg %p217
        %p583 = pneg %p214
        %p584 = scmp.lt.s32.totalorder %s33, 1
        %s585 = scalar_select %p584, %s33, 1
        %s586 = scalar_lea.vmem %s7, %s585
        %p587 = pneg %p243
        %p588 = pneg %p240
        %p589 = scmp.lt.s32.totalorder %s33, 1
        %s590 = scalar_select %p589, %s33, 1
        %s591 = scalar_lea.vmem %s8, %s590
        %p592 = pneg %p269
        %p593 = pneg %p266
        %p594 = scmp.lt.s32.totalorder %s33, 1
        %s595 = scalar_select %p594, %s33, 1
        %s596 = scalar_lea.vmem %s9, %s595
        %p597 = pneg %p295
        %p598 = pneg %p292
        %p599 = scmp.lt.s32.totalorder %s33, 1
        %s600 = scalar_select %p599, %s33, 1
        %s601 = smul.addr %s600, 4
        %s602 = smul.addr %s601, 8
        %s603 = scalar_lea.vmem %s10, %s602
        %p604 = pneg %p321
        %p605 = pneg %p318
        %p606 = scmp.lt.s32.totalorder %s33, 1
        %s607 = scalar_select %p606, %s33, 1
        %s608 = scalar_lea.vmem %s11, %s607
        %p609 = pneg %p347
        %p610 = pneg %p344
        %p611 = scmp.lt.s32.totalorder %s33, 1
        %s612 = scalar_select %p611, %s33, 1
        %s613 = smul.addr %s612, 8
        %s614 = smul.addr %s613, 8
        %s615 = scalar_lea.vmem %s12, %s614
        %p616 = pneg %p373
        %p617 = pneg %p370
        %p618 = scmp.lt.s32.totalorder %s33, 1
        %s619 = scalar_select %p618, %s33, 1
        %s620 = scalar_lea.vmem %s13, %s619
        %p621 = pneg %p399
        %p622 = pneg %p396
        %p623 = pneg %p425
        %p624 = pneg %p422
        %s625 = sand.u32 %s412, 1
        %s626 = scalar_lea.sflag [#allocation4], %s625
        %s627 = sand.u32 %s412, 1
        %s628 = smul.addr %s627, 8
        %s629 = scalar_lea.vmem [#allocation3], %s628
        %p630 = scmp.lt.s32.totalorder %s32, 1
        %s631 = scalar_select %p630, %s32, 1
        %s632 = smul.addr %s631, 8
        %s633 = scalar_lea.vmem %s0, %s632
        %p634 = scmp.lt.s32.totalorder %s32, 1
        %s635 = scalar_select %p634, %s32, 1
        %s636 = scalar_lea.vmem %s1, %s635
        %p637 = scmp.lt.s32.totalorder %s33, 1
        %s638 = scalar_select %p637, %s33, 1
        %s639 = smul.addr %s638, 4
        %s640 = smul.addr %s639, 8
        %s641 = scalar_lea.vmem %s2, %s640
        %p642 = scmp.lt.s32.totalorder %s33, 1
        %s643 = scalar_select %p642, %s33, 1
        %s644 = scalar_lea.vmem %s3, %s643
        %p645 = scmp.lt.s32.totalorder %s33, 1
        %s646 = scalar_select %p645, %s33, 1
        %s647 = smul.addr %s646, 4
        %s648 = smul.addr %s647, 8
        %s649 = scalar_lea.vmem %s4, %s648
        %p650 = scmp.lt.s32.totalorder %s33, 1
        %s651 = scalar_select %p650, %s33, 1
        %s652 = scalar_lea.vmem %s5, %s651
        %p653 = scmp.lt.s32.totalorder %s33, 1
        %s654 = scalar_select %p653, %s33, 1
        %s655 = scalar_lea.vmem %s6, %s654
        %p656 = scmp.lt.s32.totalorder %s33, 1
        %s657 = scalar_select %p656, %s33, 1
        %s658 = scalar_lea.vmem %s7, %s657
        %p659 = scmp.lt.s32.totalorder %s33, 1
        %s660 = scalar_select %p659, %s33, 1
        %s661 = scalar_lea.vmem %s8, %s660
        %p662 = scmp.lt.s32.totalorder %s33, 1
        %s663 = scalar_select %p662, %s33, 1
        %s664 = scalar_lea.vmem %s9, %s663
        %p665 = scmp.lt.s32.totalorder %s33, 1
        %s666 = scalar_select %p665, %s33, 1
        %s667 = smul.addr %s666, 4
        %s668 = smul.addr %s667, 8
        %s669 = scalar_lea.vmem %s10, %s668
        %p670 = scmp.lt.s32.totalorder %s33, 1
        %s671 = scalar_select %p670, %s33, 1
        %s672 = scalar_lea.vmem %s11, %s671
        %p673 = scmp.lt.s32.totalorder %s33, 1
        %s674 = scalar_select %p673, %s33, 1
        %s675 = smul.addr %s674, 8
        %s676 = smul.addr %s675, 8
        %s677 = scalar_lea.vmem %s12, %s676
        %p678 = scmp.lt.s32.totalorder %s33, 1
        %s679 = scalar_select %p678, %s33, 1
        %s680 = scalar_lea.vmem %s13, %s679
        %p681 = scmp.eq.s32.totalorder %s33, 0
        // Predicated region
        $region77: #{decoder_stack.1} parent=75 // pred_check
          %p682 = pneg %p681
        $region78: #{decoder_stack.1} parent=75 // pred_check_branch
          %684 = sbr.rel (%p682) target = $region80
        $region79: #{decoder_stack.1} parent=75 // pred_region
          %v685 = vld [vmem:[%s633] sm:$0xff]
          %vm686 = vcmask 261120
          %687 = vst.msk [vmem:[#allocation2] sm:$0xff] %vm686, %v685
        $region80: #{decoder_stack.1} parent=75 // pred_fallthru
          _
        %v688 = vld [vmem:[#allocation2] sm:$0xff]
        %v689 = vld [vmem:[%s636] sm:$0x1]
        %v690 = vld [vmem:[%s655] sm:$0x1]
        %v691 = vld [vmem:[%s658] sm:$0x1]
        %vm692 = vcmask 261120
        %v693 = vsel %vm692, %v688, 0.0
        %694 = vadd.xlane.f32.xlu0 %v693
        %v695 = vpop.xlane.xlu0 %694
        %v696 = vrcp.pop 32.0
        %v697 = vmul.f32 32.0, %v696
        %v698 = vsub.f32 1.0, %v697
        %v699 = vmul.f32 %v696, %v698
        %v700 = vadd.f32 %v696, %v699
        %vm701 = vweird.f32 %v696
        %v702 = vsel %vm701, %v696, %v700
        %v703 = vmul.f32 %v695, %v702
        %v704 = vsub.f32 %v688, %v703
        %v705 = vmul.f32 %v704, %v704
        %v706 = vsel %vm692, %v705, 0.0
        %707 = vadd.xlane.f32.xlu0 %v706
        %v708 = vpop.xlane.xlu0 %707
        %v709 = vmul.f32 %v708, %v702
        %v710 = vadd.f32 %v709, 1e-05
        %v711 = vrsqrt.pop %v710
        %v712 = vmul.f32 %v711, %v710
        %v713 = vmul.f32 %v712, %v711
        %v714 = vmul.f32 0.5, %v713
        %v715 = vsub.f32 1.5, %v714
        %v716 = vmul.f32 %v711, %v715
        %vm717 = vweird.f32 %v710
        %vm718 = vweird.f32 %v711
        %vm719 = vmor %vm717, %vm718
        %v720 = vsel %vm719, %v711, %v716
        %v721 = vmul.f32 %v704, %v720
        %v723 = vperm.slane %v690, 0
        %v725 = vmul.f32 %v721, %v723
        %v727 = vperm.slane %v691, 0
        %v729 = vadd.f32 %v725, %v727
        %v730 = vld [vmem:[%s641] sm:$0xff]
        %v731 = vld [vmem:[%s641 + $0x8] sm:$0xff]
        %v732 = vld [vmem:[%s641 + $0x10] sm:$0xff]
        %v733 = vld [vmem:[%s641 + $0x18] sm:$0xff]
        %v734 = vld [vmem:[%s644] sm:$0x1]
        %v736 = vperm.slane %v734, 0
        %v739 = vsel %vm692, %v729, 0
        %741 = vmatpush.msra.mxu0 0.0
        %742 = vmatpush.msra.mxu0 0.0
        %743 = vmatpush.msra.mxu0 0.0
        %744 = vmatpush.msra.mxu0 0.0
        %745 = vmatpush.msra.mxu0 0.0
        %746 = vmatpush.msra.mxu0 0.0
        %747 = vmatpush.msra.mxu0 0.0
        %748 = vmatpush.msra.mxu0 0.0
        %749 = vmatpush.msra.mxu0 0.0
        %750 = vmatpush.msra.mxu0 0.0
        %751 = vmatpush.msra.mxu0 0.0
        %752 = vmatpush.msra.mxu0 0.0
        %753 = vmatpush.msra.mxu0 %v733
        %754 = vmatpush.msra.mxu0 %v732
        %755 = vmatpush.msra.mxu0 %v731
        %756 = vmatpush.msra.mxu0 %v730
        %757 = vmatmul.f32.gmra.mxu0 %v739
        %v758 = vpop.f32.mrf.mxu0
        %v759 = vadd.f32 %v736, %v758
        %760 = vdwg.mxu0
        %v761 = vld [vmem:[%s649] sm:$0xff]
        %v762 = vld [vmem:[%s649 + $0x8] sm:$0xff]
        %v763 = vld [vmem:[%s649 + $0x10] sm:$0xff]
        %v764 = vld [vmem:[%s649 + $0x18] sm:$0xff]
        %766 = vrot.lane.b32.xlu0 %v759, 96
        %v767 = vpop.permute.xlu0 %766
        %vm768 = vcmask 64512
        %v769 = vsel %vm768, %v759, 0
        %v771 = vsel %vm768, %v767, 0
        %773 = vmatpush.xpose.msra.mxu0 0.0
        %774 = vmatpush.xpose.msra.mxu0 0.0
        %775 = vmatpush.xpose.msra.mxu0 0.0
        %776 = vmatpush.xpose.msra.mxu0 0.0
        %777 = vmatpush.xpose.msra.mxu0 0.0
        %778 = vmatpush.xpose.msra.mxu0 0.0
        %779 = vmatpush.xpose.msra.mxu0 0.0
        %780 = vmatpush.xpose.msra.mxu0 0.0
        %781 = vmatpush.xpose.msra.mxu0 0.0
        %782 = vmatpush.xpose.msra.mxu0 0.0
        %783 = vmatpush.xpose.msra.mxu0 0.0
        %784 = vmatpush.xpose.msra.mxu0 0.0
        %785 = vmatpush.xpose.msra.mxu0 0.0
        %786 = vmatpush.xpose.msra.mxu0 0.0
        %787 = vmatpush.xpose.msra.mxu0 0.0
        %788 = vmatpush.xpose.msra.mxu0 %v771
        %789 = vmatmul.f32.gmra.mxu0 %v769
        %v790 = vpop.f32.mrf.mxu0
        %v791 = vadd.f32 0.0, %v790
        %792 = vdwg.mxu0
        %v793 = vmul.f32 %v791, 0.35355338
        %v795 = vperm.slane %v689, 0
        %v797 = vadd.f32 %v793, %v795
        %v798 = vsel %vm768, %v797, -inf
        %799 = vmax.xlane.f32.xlu0 %v798
        %v800 = vpop.xlane.xlu0 %799
        %v801 = vsub.f32 %v797, %v800
        %v802 = vmul.f32 %v801, 1.442695
        %v803 = vpow.pop %v802
        %v804 = vsel %vm768, %v803, 0.0
        %805 = vadd.xlane.f32.xlu0 %v804
        %v806 = vpop.xlane.xlu0 %805
        %v807 = vrcp.pop %v806
        %v808 = vmul.f32 %v803, %v807
        %809 = vrot.lane.b32.xlu0 %v759, 64
        %v810 = vpop.permute.xlu0 %809
        %v813 = vsel %vm768, %v808, 0
        %815 = vmatpush.msra.mxu0 0.0
        %816 = vmatpush.msra.mxu0 0.0
        %817 = vmatpush.msra.mxu0 0.0
        %818 = vmatpush.msra.mxu0 0.0
        %819 = vmatpush.msra.mxu0 0.0
        %820 = vmatpush.msra.mxu0 0.0
        %821 = vmatpush.msra.mxu0 0.0
        %822 = vmatpush.msra.mxu0 0.0
        %823 = vmatpush.msra.mxu0 0.0
        %824 = vmatpush.msra.mxu0 0.0
        %825 = vmatpush.msra.mxu0 0.0
        %826 = vmatpush.msra.mxu0 0.0
        %827 = vmatpush.msra.mxu0 0.0
        %828 = vmatpush.msra.mxu0 0.0
        %829 = vmatpush.msra.mxu0 0.0
        %830 = vmatpush.msra.mxu0 %v810
        %831 = vmatmul.f32.gmra.mxu0 %v813
        %v832 = vpop.f32.mrf.mxu0
        %v833 = vadd.f32 0.0, %v832
        %834 = vdwg.mxu0
        %835 = vrot.lane.b32.xlu0 %v759, 120
        %v836 = vpop.permute.xlu0 %835
        %837 = vrot.lane.b32.xlu0 %v759, 88
        %v838 = vpop.permute.xlu0 %837
        %v839 = vsel %vm768, %v836, 0
        %v841 = vsel %vm768, %v838, 0
        %843 = vmatpush.xpose.msra.mxu0 0.0
        %844 = vmatpush.xpose.msra.mxu0 0.0
        %845 = vmatpush.xpose.msra.mxu0 0.0
        %846 = vmatpush.xpose.msra.mxu0 0.0
        %847 = vmatpush.xpose.msra.mxu0 0.0
        %848 = vmatpush.xpose.msra.mxu0 0.0
        %849 = vmatpush.xpose.msra.mxu0 0.0
        %850 = vmatpush.xpose.msra.mxu0 0.0
        %851 = vmatpush.xpose.msra.mxu0 0.0
        %852 = vmatpush.xpose.msra.mxu0 0.0
        %853 = vmatpush.xpose.msra.mxu0 0.0
        %854 = vmatpush.xpose.msra.mxu0 0.0
        %855 = vmatpush.xpose.msra.mxu0 0.0
        %856 = vmatpush.xpose.msra.mxu0 0.0
        %857 = vmatpush.xpose.msra.mxu0 0.0
        %858 = vmatpush.xpose.msra.mxu0 %v841
        %859 = vmatmul.f32.gmra.mxu0 %v839
        %v860 = vpop.f32.mrf.mxu0
        %v861 = vadd.f32 0.0, %v860
        %862 = vdwg.mxu0
        %v863 = vmul.f32 %v861, 0.35355338
        %v864 = vadd.f32 %v863, %v795
        %v865 = vsel %vm768, %v864, -inf
        %866 = vmax.xlane.f32.xlu0 %v865
        %v867 = vpop.xlane.xlu0 %866
        %v868 = vsub.f32 %v864, %v867
        %v869 = vmul.f32 %v868, 1.442695
        %v870 = vpow.pop %v869
        %v871 = vsel %vm768, %v870, 0.0
        %872 = vadd.xlane.f32.xlu0 %v871
        %v873 = vpop.xlane.xlu0 %872
        %v874 = vrcp.pop %v873
        %v875 = vmul.f32 %v870, %v874
        %876 = vrot.lane.b32.xlu0 %v759, 56
        %v877 = vpop.permute.xlu0 %876
        %v880 = vsel %vm768, %v875, 0
        %882 = vmatpush.msra.mxu0 0.0
        %883 = vmatpush.msra.mxu0 0.0
        %884 = vmatpush.msra.mxu0 0.0
        %885 = vmatpush.msra.mxu0 0.0
        %886 = vmatpush.msra.mxu0 0.0
        %887 = vmatpush.msra.mxu0 0.0
        %888 = vmatpush.msra.mxu0 0.0
        %889 = vmatpush.msra.mxu0 0.0
        %890 = vmatpush.msra.mxu0 0.0
        %891 = vmatpush.msra.mxu0 0.0
        %892 = vmatpush.msra.mxu0 0.0
        %893 = vmatpush.msra.mxu0 0.0
        %894 = vmatpush.msra.mxu0 0.0
        %895 = vmatpush.msra.mxu0 0.0
        %896 = vmatpush.msra.mxu0 0.0
        %897 = vmatpush.msra.mxu0 %v877
        %898 = vmatmul.f32.gmra.mxu0 %v880
        %v899 = vpop.f32.mrf.mxu0
        %v900 = vadd.f32 0.0, %v899
        %901 = vdwg.mxu0
        %v903 = vsel %vm768, %v900, 0
        %905 = vmatpush.msra.mxu0 0.0
        %906 = vmatpush.msra.mxu0 0.0
        %907 = vmatpush.msra.mxu0 0.0
        %908 = vmatpush.msra.mxu0 0.0
        %909 = vmatpush.msra.mxu0 0.0
        %910 = vmatpush.msra.mxu0 0.0
        %911 = vmatpush.msra.mxu0 0.0
        %912 = vmatpush.msra.mxu0 0.0
        %913 = vmatpush.msra.mxu0 0.0
        %914 = vmatpush.msra.mxu0 0.0
        %915 = vmatpush.msra.mxu0 0.0
        %916 = vmatpush.msra.mxu0 0.0
        %917 = vmatpush.msra.mxu0 0.0
        %918 = vmatpush.msra.mxu0 0.0
        %919 = vmatpush.msra.mxu0 0.0
        %920 = vmatpush.msra.mxu0 %v762
        %921 = vmatmul.f32.gmra.mxu0 %v903
        %v922 = vpop.f32.mrf.mxu0
        %v923 = vadd.f32 0.0, %v922
        %924 = vdwg.mxu0
        %v926 = vsel %vm768, %v833, 0
        %928 = vmatpush.msra.mxu0 0.0
        %929 = vmatpush.msra.mxu0 0.0
        %930 = vmatpush.msra.mxu0 0.0
        %931 = vmatpush.msra.mxu0 0.0
        %932 = vmatpush.msra.mxu0 0.0
        %933 = vmatpush.msra.mxu0 0.0
        %934 = vmatpush.msra.mxu0 0.0
        %935 = vmatpush.msra.mxu0 0.0
        %936 = vmatpush.msra.mxu0 0.0
        %937 = vmatpush.msra.mxu0 0.0
        %938 = vmatpush.msra.mxu0 0.0
        %939 = vmatpush.msra.mxu0 0.0
        %940 = vmatpush.msra.mxu0 0.0
        %941 = vmatpush.msra.mxu0 0.0
        %942 = vmatpush.msra.mxu0 0.0
        %943 = vmatpush.msra.mxu0 %v761
        %944 = vmatmul.f32.gmra.mxu0 %v926
        %v945 = vpop.f32.mrf.mxu0
        %v946 = vadd.f32 %v923, %v945
        %947 = vdwg.mxu0
        %948 = vrot.lane.b32.xlu0 %v759, 112
        %v949 = vpop.permute.xlu0 %948
        %950 = vrot.lane.b32.xlu0 %v759, 80
        %v951 = vpop.permute.xlu0 %950
        %v952 = vsel %vm768, %v949, 0
        %v954 = vsel %vm768, %v951, 0
        %956 = vmatpush.xpose.msra.mxu0 0.0
        %957 = vmatpush.xpose.msra.mxu0 0.0
        %958 = vmatpush.xpose.msra.mxu0 0.0
        %959 = vmatpush.xpose.msra.mxu0 0.0
        %960 = vmatpush.xpose.msra.mxu0 0.0
        %961 = vmatpush.xpose.msra.mxu0 0.0
        %962 = vmatpush.xpose.msra.mxu0 0.0
        %963 = vmatpush.xpose.msra.mxu0 0.0
        %964 = vmatpush.xpose.msra.mxu0 0.0
        %965 = vmatpush.xpose.msra.mxu0 0.0
        %966 = vmatpush.xpose.msra.mxu0 0.0
        %967 = vmatpush.xpose.msra.mxu0 0.0
        %968 = vmatpush.xpose.msra.mxu0 0.0
        %969 = vmatpush.xpose.msra.mxu0 0.0
        %970 = vmatpush.xpose.msra.mxu0 0.0
        %971 = vmatpush.xpose.msra.mxu0 %v954
        %972 = vmatmul.f32.gmra.mxu0 %v952
        %v973 = vpop.f32.mrf.mxu0
        %v974 = vadd.f32 0.0, %v973
        %975 = vdwg.mxu0
        %v976 = vmul.f32 %v974, 0.35355338
        %v977 = vadd.f32 %v976, %v795
        %v978 = vsel %vm768, %v977, -inf
        %979 = vmax.xlane.f32.xlu0 %v978
        %v980 = vpop.xlane.xlu0 %979
        %v981 = vsub.f32 %v977, %v980
        %v982 = vmul.f32 %v981, 1.442695
        %v983 = vpow.pop %v982
        %v984 = vsel %vm768, %v983, 0.0
        %985 = vadd.xlane.f32.xlu0 %v984
        %v986 = vpop.xlane.xlu0 %985
        %v987 = vrcp.pop %v986
        %v988 = vmul.f32 %v983, %v987
        %989 = vrot.lane.b32.xlu0 %v759, 48
        %v990 = vpop.permute.xlu0 %989
        %v993 = vsel %vm768, %v988, 0
        %995 = vmatpush.msra.mxu0 0.0
        %996 = vmatpush.msra.mxu0 0.0
        %997 = vmatpush.msra.mxu0 0.0
        %998 = vmatpush.msra.mxu0 0.0
        %999 = vmatpush.msra.mxu0 0.0
        %1000 = vmatpush.msra.mxu0 0.0
        %1001 = vmatpush.msra.mxu0 0.0
        %1002 = vmatpush.msra.mxu0 0.0
        %1003 = vmatpush.msra.mxu0 0.0
        %1004 = vmatpush.msra.mxu0 0.0
        %1005 = vmatpush.msra.mxu0 0.0
        %1006 = vmatpush.msra.mxu0 0.0
        %1007 = vmatpush.msra.mxu0 0.0
        %1008 = vmatpush.msra.mxu0 0.0
        %1009 = vmatpush.msra.mxu0 0.0
        %1010 = vmatpush.msra.mxu0 %v990
        %1011 = vmatmul.f32.gmra.mxu0 %v993
        %v1012 = vpop.f32.mrf.mxu0
        %v1013 = vadd.f32 0.0, %v1012
        %1014 = vdwg.mxu0
        %v1016 = vsel %vm768, %v1013, 0
        %1018 = vmatpush.msra.mxu0 0.0
        %1019 = vmatpush.msra.mxu0 0.0
        %1020 = vmatpush.msra.mxu0 0.0
        %1021 = vmatpush.msra.mxu0 0.0
        %1022 = vmatpush.msra.mxu0 0.0
        %1023 = vmatpush.msra.mxu0 0.0
        %1024 = vmatpush.msra.mxu0 0.0
        %1025 = vmatpush.msra.mxu0 0.0
        %1026 = vmatpush.msra.mxu0 0.0
        %1027 = vmatpush.msra.mxu0 0.0
        %1028 = vmatpush.msra.mxu0 0.0
        %1029 = vmatpush.msra.mxu0 0.0
        %1030 = vmatpush.msra.mxu0 0.0
        %1031 = vmatpush.msra.mxu0 0.0
        %1032 = vmatpush.msra.mxu0 0.0
        %1033 = vmatpush.msra.mxu0 %v763
        %1034 = vmatmul.f32.gmra.mxu0 %v1016
        %v1035 = vpop.f32.mrf.mxu0
        %v1036 = vadd.f32 0.0, %v1035
        %1037 = vdwg.mxu0
        %v1038 = vadd.f32 %v946, %v1036
        %1039 = vrot.lane.b32.xlu0 %v759, 104
        %v1040 = vpop.permute.xlu0 %1039
        %1041 = vrot.lane.b32.xlu0 %v759, 72
        %v1042 = vpop.permute.xlu0 %1041
        %v1043 = vsel %vm768, %v1040, 0
        %v1045 = vsel %vm768, %v1042, 0
        %1047 = vmatpush.xpose.msra.mxu0 0.0
        %1048 = vmatpush.xpose.msra.mxu0 0.0
        %1049 = vmatpush.xpose.msra.mxu0 0.0
        %1050 = vmatpush.xpose.msra.mxu0 0.0
        %1051 = vmatpush.xpose.msra.mxu0 0.0
        %1052 = vmatpush.xpose.msra.mxu0 0.0
        %1053 = vmatpush.xpose.msra.mxu0 0.0
        %1054 = vmatpush.xpose.msra.mxu0 0.0
        %1055 = vmatpush.xpose.msra.mxu0 0.0
        %1056 = vmatpush.xpose.msra.mxu0 0.0
        %1057 = vmatpush.xpose.msra.mxu0 0.0
        %1058 = vmatpush.xpose.msra.mxu0 0.0
        %1059 = vmatpush.xpose.msra.mxu0 0.0
        %1060 = vmatpush.xpose.msra.mxu0 0.0
        %1061 = vmatpush.xpose.msra.mxu0 0.0
        %1062 = vmatpush.xpose.msra.mxu0 %v1045
        %1063 = vmatmul.f32.gmra.mxu0 %v1043
        %v1064 = vpop.f32.mrf.mxu0
        %v1065 = vadd.f32 0.0, %v1064
        %1066 = vdwg.mxu0
        %v1067 = vmul.f32 %v1065, 0.35355338
        %v1068 = vadd.f32 %v1067, %v795
        %v1069 = vsel %vm768, %v1068, -inf
        %1070 = vmax.xlane.f32.xlu0 %v1069
        %v1071 = vpop.xlane.xlu0 %1070
        %v1072 = vsub.f32 %v1068, %v1071
        %v1073 = vmul.f32 %v1072, 1.442695
        %v1074 = vpow.pop %v1073
        %v1075 = vsel %vm768, %v1074, 0.0
        %1076 = vadd.xlane.f32.xlu0 %v1075
        %v1077 = vpop.xlane.xlu0 %1076
        %v1078 = vrcp.pop %v1077
        %v1079 = vmul.f32 %v1074, %v1078
        %1080 = vrot.lane.b32.xlu0 %v759, 40
        %v1081 = vpop.permute.xlu0 %1080
        %v1084 = vsel %vm768, %v1079, 0
        %1086 = vmatpush.msra.mxu0 0.0
        %1087 = vmatpush.msra.mxu0 0.0
        %1088 = vmatpush.msra.mxu0 0.0
        %1089 = vmatpush.msra.mxu0 0.0
        %1090 = vmatpush.msra.mxu0 0.0
        %1091 = vmatpush.msra.mxu0 0.0
        %1092 = vmatpush.msra.mxu0 0.0
        %1093 = vmatpush.msra.mxu0 0.0
        %1094 = vmatpush.msra.mxu0 0.0
        %1095 = vmatpush.msra.mxu0 0.0
        %1096 = vmatpush.msra.mxu0 0.0
        %1097 = vmatpush.msra.mxu0 0.0
        %1098 = vmatpush.msra.mxu0 0.0
        %1099 = vmatpush.msra.mxu0 0.0
        %1100 = vmatpush.msra.mxu0 0.0
        %1101 = vmatpush.msra.mxu0 %v1081
        %1102 = vmatmul.f32.gmra.mxu0 %v1084
        %v1103 = vpop.f32.mrf.mxu0
        %v1104 = vadd.f32 0.0, %v1103
        %1105 = vdwg.mxu0
        %v1107 = vsel %vm768, %v1104, 0
        %1109 = vmatpush.msra.mxu0 0.0
        %1110 = vmatpush.msra.mxu0 0.0
        %1111 = vmatpush.msra.mxu0 0.0
        %1112 = vmatpush.msra.mxu0 0.0
        %1113 = vmatpush.msra.mxu0 0.0
        %1114 = vmatpush.msra.mxu0 0.0
        %1115 = vmatpush.msra.mxu0 0.0
        %1116 = vmatpush.msra.mxu0 0.0
        %1117 = vmatpush.msra.mxu0 0.0
        %1118 = vmatpush.msra.mxu0 0.0
        %1119 = vmatpush.msra.mxu0 0.0
        %1120 = vmatpush.msra.mxu0 0.0
        %1121 = vmatpush.msra.mxu0 0.0
        %1122 = vmatpush.msra.mxu0 0.0
        %1123 = vmatpush.msra.mxu0 0.0
        %1124 = vmatpush.msra.mxu0 %v764
        %1125 = vmatmul.f32.gmra.mxu0 %v1107
        %v1126 = vpop.f32.mrf.mxu0
        %v1127 = vadd.f32 0.0, %v1126
        %1128 = vdwg.mxu0
        %v1129 = vadd.f32 %v1038, %v1127
        %v1130 = vld [vmem:[%s652] sm:$0x1]
        %v1132 = vperm.slane %v1130, 0
        %v1134 = vadd.f32 %v1129, %v1132
        %v1135 = vadd.f32 %v688, %v1134
        %v1136 = vld [vmem:[%s661] sm:$0x1]
        %v1137 = vld [vmem:[%s664] sm:$0x1]
        %v1138 = vsel %vm692, %v1135, 0.0
        %1139 = vadd.xlane.f32.xlu0 %v1138
        %v1140 = vpop.xlane.xlu0 %1139
        %v1141 = vmul.f32 %v1140, %v702
        %v1142 = vsub.f32 %v1135, %v1141
        %v1143 = vmul.f32 %v1142, %v1142
        %v1144 = vsel %vm692, %v1143, 0.0
        %1145 = vadd.xlane.f32.xlu0 %v1144
        %v1146 = vpop.xlane.xlu0 %1145
        %v1147 = vmul.f32 %v1146, %v702
        %v1148 = vadd.f32 %v1147, 1e-05
        %v1149 = vrsqrt.pop %v1148
        %v1150 = vmul.f32 %v1149, %v1148
        %v1151 = vmul.f32 %v1150, %v1149
        %v1152 = vmul.f32 0.5, %v1151
        %v1153 = vsub.f32 1.5, %v1152
        %v1154 = vmul.f32 %v1149, %v1153
        %vm1155 = vweird.f32 %v1148
        %vm1156 = vweird.f32 %v1149
        %vm1157 = vmor %vm1155, %vm1156
        %v1158 = vsel %vm1157, %v1149, %v1154
        %v1159 = vmul.f32 %v1142, %v1158
        %v1161 = vperm.slane %v1136, 0
        %v1163 = vmul.f32 %v1159, %v1161
        %v1165 = vperm.slane %v1137, 0
        %v1167 = vadd.f32 %v1163, %v1165
        %v1168 = vld [vmem:[%s669] sm:$0xff]
        %v1169 = vld [vmem:[%s669 + $0x8] sm:$0xff]
        %v1170 = vld [vmem:[%s669 + $0x10] sm:$0xff]
        %v1171 = vld [vmem:[%s669 + $0x18] sm:$0xff]
        %v1172 = vld [vmem:[%s672] sm:$0x1]
        %v1174 = vperm.slane %v1172, 0
        %v1177 = vsel %vm692, %v1167, 0
        %1179 = vmatpush.msra.mxu0 0.0
        %1180 = vmatpush.msra.mxu0 0.0
        %1181 = vmatpush.msra.mxu0 0.0
        %1182 = vmatpush.msra.mxu0 0.0
        %1183 = vmatpush.msra.mxu0 0.0
        %1184 = vmatpush.msra.mxu0 0.0
        %1185 = vmatpush.msra.mxu0 0.0
        %1186 = vmatpush.msra.mxu0 0.0
        %1187 = vmatpush.msra.mxu0 0.0
        %1188 = vmatpush.msra.mxu0 0.0
        %1189 = vmatpush.msra.mxu0 0.0
        %1190 = vmatpush.msra.mxu0 0.0
        %1191 = vmatpush.msra.mxu0 %v1171
        %1192 = vmatpush.msra.mxu0 %v1170
        %1193 = vmatpush.msra.mxu0 %v1169
        %1194 = vmatpush.msra.mxu0 %v1168
        %1195 = vmatmul.f32.gmra.mxu0 %v1177
        %v1196 = vpop.f32.mrf.mxu0
        %v1197 = vadd.f32 %v1174, %v1196
        %1198 = vdwg.mxu0
        %v1199 = vmax.f32 %v1197, 0.0
        %v1200 = vld [vmem:[%s677] sm:$0xff]
        %v1201 = vld [vmem:[%s677 + $0x8] sm:$0xff]
        %v1202 = vld [vmem:[%s677 + $0x10] sm:$0xff]
        %v1203 = vld [vmem:[%s677 + $0x18] sm:$0xff]
        %v1204 = vld [vmem:[%s677 + $0x20] sm:$0xff]
        %v1205 = vld [vmem:[%s677 + $0x28] sm:$0xff]
        %v1206 = vld [vmem:[%s677 + $0x30] sm:$0xff]
        %v1207 = vld [vmem:[%s677 + $0x38] sm:$0xff]
        %v1208 = vld [vmem:[%s680] sm:$0x1]
        %v1210 = vperm.slane %v1208, 0
        %vm1212 = vcmask 523264
        %v1214 = vsel %vm1212, %v1199, 0
        %1216 = vmatpush.msra.mxu0 0.0
        %1217 = vmatpush.msra.mxu0 0.0
        %1218 = vmatpush.msra.mxu0 0.0
        %1219 = vmatpush.msra.mxu0 0.0
        %1220 = vmatpush.msra.mxu0 0.0
        %1221 = vmatpush.msra.mxu0 0.0
        %1222 = vmatpush.msra.mxu0 0.0
        %1223 = vmatpush.msra.mxu0 0.0
        %1224 = vmatpush.msra.mxu0 %v1207
        %1225 = vmatpush.msra.mxu0 %v1206
        %1226 = vmatpush.msra.mxu0 %v1205
        %1227 = vmatpush.msra.mxu0 %v1204
        %1228 = vmatpush.msra.mxu0 %v1203
        %1229 = vmatpush.msra.mxu0 %v1202
        %1230 = vmatpush.msra.mxu0 %v1201
        %1231 = vmatpush.msra.mxu0 %v1200
        %1232 = vmatmul.f32.gmra.mxu0 %v1214
        %v1233 = vpop.f32.mrf.mxu0
        %v1234 = vadd.f32 %v1210, %v1233
        %1235 = vdwg.mxu0
        %v1236 = vadd.f32 %v1135, %v1234
        %1237 = vst.msk [vmem:[#allocation2] sm:$0xff] %vm692, %v1236
        %p1238 = scmp.eq.s32.totalorder %s33, 1
        // Predicated region
        $region81: #{decoder_stack.1} parent=75 // pred_check
          %p1239 = pneg %p1238
        $region82: #{decoder_stack.1} parent=75 // pred_check_branch
          %1241 = sbr.rel (%p1239) target = $region84
        $region83: #{decoder_stack.1} parent=75 // pred_region
          %1242 = vst.msk [vmem:[%s629] sm:$0xff] %vm692, %v1236
        $region84: #{decoder_stack.1} parent=75 // pred_fallthru
          _
        %s1243 = sand.u32 %s412, 1
        %s1244 = scalar_lea.sflag [#allocation4], %s1243
        %s1245 = sand.u32 %s412, 1
        %s1246 = smul.addr %s1245, 8
        %s1247 = scalar_lea.vmem [#allocation3], %s1246
        // Predicated region
        $region85: #{decoder_stack.1} parent=75 // pred_check
          %p1248 = pneg %p422
        $region86: #{decoder_stack.1} parent=75 // pred_check_branch
          %1250 = sbr.rel (%p1248) target = $region88
        $region87: #{decoder_stack.1} parent=75 // pred_region
          %1252 = vsyncadd %s1244, 0
          %s1253 = smul.addr %s32, 8
          %s1254 = scalar_lea.hbm %s14, %s1253
          %s1256 = sshll.u32 %s1247, 4
          %s1257 = int_to_ptr.vmem [resolvable:$true] %s1256
          %s1258 = sshll.u32 %s1254, 4
          %s1259 = int_to_ptr.hbm [resolvable:$true] %s1258
          %1261 = dma.vmem_to_hbm [thread:$0]  %s1257, 128, %s1259, %s1244
        $region88: #{decoder_stack.1} parent=75 // pred_fallthru
          _
      $region76: #{decoder_stack.1} parent=5 // pred_fallthru
        _
      %p1262 = scmp.le.s32.totalorder 2, %s23
      // Predicated region
      $region89: #{decoder_stack.1} parent=5 // pred_check
        %p1263 = pneg %p1262
      $region90: #{decoder_stack.1} parent=5 // pred_check_branch
        %1265 = sbr.rel (%p1263) target = $region92
      $region91: #{decoder_stack.1} parent=5 // pred_region
        %s1266 = ssub.s32 %s23, 2
        // Predicated region
        $region93: #{decoder_stack.1} parent=91 // pred_check
          %p1267 = pneg %p428
        $region94: #{decoder_stack.1} parent=91 // pred_check_branch
          %1269 = sbr.rel (%p1267) target = $region96
        $region95: #{decoder_stack.1} parent=91 // pred_region
          %s1270 = sand.u32 %s413, 1
          %s1271 = scalar_lea.sflag [#allocation4], %s1270
          %s1272 = sand.u32 %s413, 1
          %s1273 = smul.addr %s1272, 8
          %s1274 = scalar_lea.vmem [#allocation3], %s1273
          %1276 = dma.done %s1271, 128
        $region96: #{decoder_stack.1} parent=91 // pred_fallthru
          _
      $region92: #{decoder_stack.1} parent=5 // pred_fallthru
        _
    $region6: #{decoder_stack.1} parent=1 // loop_footer
      %s27 = sadd.s32 1, %s23
    $region7: #{decoder_stack.1} parent=1 // loop_footer_branch
      %22 = sbr.rel target = $region3
    $region8: #{decoder_stack.1} parent=1 // loop_exit
      _
    %1277 = vsyncpa [#allocation4], 1
    %s1278 = scalar_lea.sflag [#allocation4], 1
    %1279 = vsyncpa %s1278, 1

</llo_original>
